<compile_context>
chip_gen: v7x
topology: tpu7x:2x2x1
jax: 0.10.0
libtpu: 0.0.40
codegen_flags: <defaults>
</compile_context>

<pallas_src>
import functools

import jax
import jax.numpy as jnp
from jax.experimental import pallas as pl
from jax.experimental.pallas import tpu as pltpu


# ---------------- Kernel A: fused multi-output projection ----------------
def _proj_kernel(x_ref, w_ref, wh_ref, f1_ref, f2_ref, *, nheads, fout):
    # ONE MXU pass: x @ [W_0 | ... | W_{H-1} | W@a1 | W@a2]
    r = jnp.dot(x_ref[...], w_ref[...], preferred_element_type=jnp.float32)
    hf = nheads * fout
    tm = r.shape[0]
    ones = jnp.ones((tm, 1), jnp.float32)
    for h in range(nheads):                                   # static, nheads is tiny
        wh_ref[h, :, 0:fout] = r[:, h * fout:(h + 1) * fout]  # per-head value block
        wh_ref[h, :, fout:fout + 1] = ones                    # fused row-sum column
    f1_ref[...] = r[:, hf:hf + nheads]                        # query-side logits
    f2_ref[...] = r[:, hf + nheads:hf + 2 * nheads]           # key-side logits


def _fused_projection(xp, wcat, nheads, fout, tile):
    np_, fin = xp.shape
    d = wcat.shape[1]
    fo1 = fout + 1
    kern = functools.partial(_proj_kernel, nheads=nheads, fout=fout)
    return pl.pallas_call(
        kern,
        out_shape=(
            jax.ShapeDtypeStruct((nheads, np_, fo1), jnp.float32),   # [Wh_h | 1]
            jax.ShapeDtypeStruct((np_, nheads), jnp.float32),        # f1
            jax.ShapeDtypeStruct((np_, nheads), jnp.float32),        # f2
        ),
        grid=(np_ // tile,),
        in_specs=[
            pl.BlockSpec((tile, fin), lambda i: (i, 0)),
            pl.BlockSpec((fin, d), lambda i: (0, 0)),
        ],
        out_specs=(
            pl.BlockSpec((nheads, tile, fo1), lambda i: (0, i, 0)),
            pl.BlockSpec((tile, nheads), lambda i: (i, 0)),
            pl.BlockSpec((tile, nheads), lambda i: (i, 0)),
        ),
        compiler_params=pltpu.CompilerParams(dimension_semantics=("parallel",)),
    )(xp, wcat)


# ---------------- Kernel B: tiled masked attention ----------------
def _attn_kernel(f1_ref, f2t_ref, wh_ref, mask_ref, o_ref, acc_sc,
                 *, alpha, nheads, fout, apply_elu, apply_log_softmax):
    ki = pl.program_id(1)

    @pl.when(ki == 0)
    def _init():
        acc_sc[...] = jnp.zeros_like(acc_sc)

    maskf = mask_ref[...].astype(jnp.float32)                 # (tq, tk) int8 -> f32 once

    for h in range(nheads):                                   # static unroll over heads
        s = f1_ref[:, h:h + 1] + f2t_ref[h:h + 1, :]          # (tq, tk) attention logits
        t = jnp.where(s > 0, -s, (-alpha) * s)                # -LeakyReLU_alpha(s)
        p = jnp.exp(t) * maskf                                # non-edges are exactly 0
        # One MXU call gives both weighted sum and row-sum: wh_ref[h] = [Wh_h | 1]
        acc_sc[h] = acc_sc[h] + jnp.dot(p, wh_ref[h],
                                        preferred_element_type=jnp.float32)

    @pl.when(ki == pl.num_programs(1) - 1)
    def _finalize():
        outs = []
        for h in range(nheads):
            a = acc_sc[h]                                     # (tq, fout + 1)
            hp = a[:, 0:fout] * pl.reciprocal(a[:, fout:fout + 1], approx=False)
            if apply_elu:
                hp = jnp.where(hp > 0, hp, jnp.exp(hp) - 1.0) # ELU(alpha=1)
            outs.append(hp)
        out = outs[0] if nheads == 1 else jnp.concatenate(outs, axis=-1)
        if apply_log_softmax:                                 # only on the output layer (H == 1)
            z = out - jnp.max(out, axis=-1, keepdims=True)
            out = z - jnp.log(jnp.sum(jnp.exp(z), axis=-1, keepdims=True))
        o_ref[...] = out.astype(o_ref.dtype)                  # single lane-packed store


# ------------------------------ layer wrapper ------------------------------
def sp_gat_layer(xp, adj_mask, W, a, alpha, *, apply_elu, apply_log_softmax,
                 tq=256, tk=512):
    """One multi-head SpGraphAttentionLayer on padded inputs.
    xp: (Np, Fin) zero-padded; adj_mask: (Np, Np) int8; W: (H, Fin, Fout);
    a: (H, 2*Fout).  Returns (Np, H*Fout), heads packed as torch.cat(dim=1)."""
    np_, fin = xp.shape
    nheads, fin_w, fout = W.shape
    assert fin == fin_w
    assert np_ % tq == 0 and np_ % tk == 0
    if apply_log_softmax:
        assert nheads == 1
    fo1 = fout + 1

    # Fused projection weights: [W heads | W@a1 | W@a2]  (tiny XLA prep on weights).
    a1 = a[:, :fout]
    a2 = a[:, fout:]
    w_cols = jnp.transpose(W, (1, 0, 2)).reshape(fin, nheads * fout)
    p1 = jnp.einsum("hif,hf->ih", W, a1)                      # (Fin, H)
    p2 = jnp.einsum("hif,hf->ih", W, a2)                      # (Fin, H)
    wcat = jnp.concatenate([w_cols, p1, p2], axis=-1)         # (Fin, H*Fout + 2H)

    wh, f1, f2 = _fused_projection(xp, wcat, nheads, fout, tile=tq)
    f2t = f2.T                                                # (H, Np): few-KB XLA transpose

    kernel = functools.partial(_attn_kernel, alpha=alpha, nheads=nheads, fout=fout,
                               apply_elu=apply_elu, apply_log_softmax=apply_log_softmax)
    out = pl.pallas_call(
        kernel,
        out_shape=jax.ShapeDtypeStruct((np_, nheads * fout), xp.dtype),
        grid_spec=pltpu.PrefetchScalarGridSpec(
            num_scalar_prefetch=0,
            grid=(np_ // tq, np_ // tk),                      # (q tiles, k tiles)
            in_specs=[
                pl.BlockSpec((tq, nheads), lambda qi, ki: (qi, 0)),          # f1 (queries)
                pl.BlockSpec((nheads, tk), lambda qi, ki: (0, ki)),          # f2^T (keys)
                pl.BlockSpec((nheads, tk, fo1), lambda qi, ki: (0, ki, 0)),  # [Wh | 1] (keys)
                pl.BlockSpec((tq, tk), lambda qi, ki: (qi, ki)),             # int8 edge mask
            ],
            out_specs=pl.BlockSpec((tq, nheads * fout), lambda qi, ki: (qi, 0)),
            scratch_shapes=[
                pltpu.VMEM((nheads, tq, fo1), jnp.float32),   # per-head [acc | rowsum]
            ],
        ),
        compiler_params=pltpu.CompilerParams(
            dimension_semantics=("parallel", "arbitrary"),
            vmem_limit_bytes=48 * 1024 * 1024,                # fits v7x (64 MiB) with headroom
        ),
    )(f1, f2t, wh, adj_mask)
    return out


def _edge_mask_int8(adj, np_):
    """0/1 edge mask as int8, padded to (Np, Np).  Padded rows get a self-loop so
    their row-sum is nonzero (padded rows are discarded at the end).  Rows of the
    real graph with no edges divide by zero, matching the torch reference."""
    n = adj.shape[0]
    mask = (adj != 0).astype(jnp.int8)
    mask = jnp.pad(mask, ((0, np_ - n), (0, np_ - n)))
    if np_ > n:
        idx = jnp.arange(np_)
        pad_diag = ((idx[:, None] == idx[None, :]) & (idx[:, None] >= n)).astype(jnp.int8)
        mask = jnp.maximum(mask, pad_diag)
    return mask


def spgat_forward(x, adj, params, alpha, *, tq=256, tk=512):
    """SpGAT.forward in eval mode (F.dropout -> identity)."""
    assert tk % tq == 0
    n = x.shape[0]
    np_ = pl.cdiv(n, tk) * tk
    mask = _edge_mask_int8(adj, np_)                          # shared by both layers
    xp = jnp.pad(x, ((0, np_ - n), (0, 0)))                   # padded nodes: zero features

    W1, a1 = params["attentions"]
    h = sp_gat_layer(xp, mask, W1, a1, alpha, apply_elu=True,
                     apply_log_softmax=False, tq=tq, tk=tk)   # (Np, nheads*nhid); pad rows stay 0
    Wo, ao = params["out"]
    out = sp_gat_layer(h, mask, Wo, ao, alpha, apply_elu=True,
                       apply_log_softmax=True, tq=tq, tk=tk)  # (Np, nclass) log-probs
    return out[:n]


# ---------------- pure-JAX reference (for correctness check) ----------------
def _ref_layer_head(x, adj, W, a, alpha):
    fout = W.shape[1]
    h = x @ W
    f1 = h @ a[:fout]
    f2 = h @ a[fout:]
    s = f1[:, None] + f2[None, :]
    e = jnp.exp(-jnp.where(s > 0, s, alpha * s)) * (adj != 0)
    rowsum = jnp.sum(e, axis=1, keepdims=True)
    return (e @ h) / rowsum


def _ref_forward(x, adj, params, alpha):
    W1, a1 = params["attentions"]
    heads = [jax.nn.elu(_ref_layer_head(x, adj, W1[h], a1[h], alpha))
             for h in range(W1.shape[0])]
    x1 = jnp.concatenate(heads, axis=1)
    Wo, ao = params["out"]
    out = jax.nn.elu(_ref_layer_head(x1, adj, Wo[0], ao[0], alpha))
    return jax.nn.log_softmax(out, axis=1)


# ---------------- deterministic parameter init ----------------
def init_params(key, nfeat, nhid, nclass, nheads):
    k1, k2, k3, k4 = jax.random.split(key, 4)
    W1 = jax.random.normal(k1, (nheads, nfeat, nhid), jnp.float32) / jnp.sqrt(nfeat)
    a1 = jax.random.normal(k2, (nheads, 2 * nhid), jnp.float32) * 0.1
    Wo = jax.random.normal(k3, (1, nhid * nheads, nclass), jnp.float32) / jnp.sqrt(nhid * nheads)
    ao = jax.random.normal(k4, (1, 2 * nclass), jnp.float32) * 0.1
    return {"attentions": (W1, a1), "out": (Wo, ao)}


if __name__ == "__main__":
    # SpGAT(nfeat=16, nhid=8, nclass=4, dropout=0.6, alpha=0.2, nheads=2), eval mode.
    nfeat, nhid, nclass, nheads, alpha = 16, 8, 4, 2, 0.2

    key = jax.random.PRNGKey(0)
    key, kp = jax.random.split(key)
    params = init_params(kp, nfeat, nhid, nclass, nheads)

    def make_graph(k, n):
        kx, ka = jax.random.split(k)
        xg = jax.random.normal(kx, (n, nfeat), jnp.float32)
        ag = (jax.random.uniform(ka, (n, n)) > 0.5).astype(jnp.float32)
        ag = jnp.maximum(ag, jnp.eye(n, dtype=jnp.float32))   # self loops (non-empty rows)
        return xg, ag

    # n=8: single k tile, heavy padding.  n=700: Np=1024 -> 4 q tiles x 2 k tiles,
    # exercising the cross-k-tile accumulator and megacore-parallel q axis.
    for n in (8, 700):
        key, kg = jax.random.split(key)
        x, adj = make_graph(kg, n)
        out = jax.block_until_ready(spgat_forward(x, adj, params, alpha))
        ref = _ref_forward(x, adj, params, alpha)
        assert out.shape == (n, nclass), out.shape
        err = float(jnp.max(jnp.abs(out - ref)))
        assert jnp.allclose(out, ref, atol=2e-4, rtol=2e-4), err

    print("KERNEL_OK")
</pallas_src>

<mosaic_0001>
module attributes {stable_mosaic.version = 11 : i64} {
  func.func @_proj_kernel(%arg0: i32, %arg1: memref<256x16xf32, #tpu.memory_space<vmem>>, %arg2: memref<16x20xf32, #tpu.memory_space<vmem>>, %arg3: memref<2x256x9xf32, #tpu.memory_space<vmem>>, %arg4: memref<256x2xf32, #tpu.memory_space<vmem>>, %arg5: memref<256x2xf32, #tpu.memory_space<vmem>>) attributes {dimension_semantics = [#tpu.dimension_semantics<parallel>], iteration_bounds = array<i64: 2>, scalar_prefetch = 0 : i64, scratch_operands = 0 : i64, tpu.core_type = #tpu.core_type<tc>, window_params = [{transform_indices = @transform_0, window_bounds = array<i64: 256, 16>}, {pipeline_mode = #tpu.pipeline_mode<synchronous>, transform_indices = @transform_1, window_bounds = array<i64: 16, 20>}, {transform_indices = @transform_2, window_bounds = array<i64: 2, 256, 9>}, {transform_indices = @transform_3, window_bounds = array<i64: 256, 2>}, {transform_indices = @transform_4, window_bounds = array<i64: 256, 2>}]} {
    %c0 = arith.constant 0 : index
    %c0_0 = arith.constant 0 : index
    %0 = vector.load %arg1[%c0, %c0_0] : memref<256x16xf32, #tpu.memory_space<vmem>>, vector<256x16xf32>
    %c0_1 = arith.constant 0 : index
    %c0_2 = arith.constant 0 : index
    %1 = vector.load %arg2[%c0_1, %c0_2] : memref<16x20xf32, #tpu.memory_space<vmem>>, vector<16x20xf32>
    %cst = arith.constant dense<0.000000e+00> : vector<256x20xf32>
    %2 = tpu.matmul %0, %1, %cst {dimension_numbers = #tpu.dot_dimension_numbers<[1], [0], [0], [1], [0, 0, 1, 1], [], []>} : vector<256x16xf32>, vector<16x20xf32>, vector<256x20xf32> -> vector<256x20xf32>
    %cst_3 = arith.constant 1.000000e+00 : f32
    %3 = vector.broadcast %cst_3 : f32 to vector<256x1xf32>
    %4 = vector.extract_strided_slice %2 {offsets = [0, 0], sizes = [256, 8], strides = [1, 1]} : vector<256x20xf32> to vector<256x8xf32>
    %c0_4 = arith.constant 0 : index
    %c0_5 = arith.constant 0 : index
    %c0_6 = arith.constant 0 : index
    %5 = vector.load %arg3[%c0_4, %c0_5, %c0_6] : memref<2x256x9xf32, #tpu.memory_space<vmem>>, vector<1x256x8xf32>
    %6 = vector.shape_cast %5 : vector<1x256x8xf32> to vector<256x8xf32>
    %7 = vector.shape_cast %4 : vector<256x8xf32> to vector<1x256x8xf32>
    tpu.vector_store %arg3[%c0_4, %c0_5, %c0_6], %7 {strides = array<i32>} : memref<2x256x9xf32, #tpu.memory_space<vmem>>, vector<1x256x8xf32>,
    %c0_7 = arith.constant 0 : index
    %c0_8 = arith.constant 0 : index
    %c8 = arith.constant 8 : index
    %8 = vector.load %arg3[%c0_7, %c0_8, %c8] : memref<2x256x9xf32, #tpu.memory_space<vmem>>, vector<1x256x1xf32>
    %9 = vector.shape_cast %8 : vector<1x256x1xf32> to vector<256x1xf32>
    %10 = vector.shape_cast %3 : vector<256x1xf32> to vector<1x256x1xf32>
    tpu.vector_store %arg3[%c0_7, %c0_8, %c8], %10 {strides = array<i32>} : memref<2x256x9xf32, #tpu.memory_space<vmem>>, vector<1x256x1xf32>,
    %11 = vector.extract_strided_slice %2 {offsets = [0, 8], sizes = [256, 8], strides = [1, 1]} : vector<256x20xf32> to vector<256x8xf32>
    %c1 = arith.constant 1 : index
    %c0_9 = arith.constant 0 : index
    %c0_10 = arith.constant 0 : index
    %12 = vector.load %arg3[%c1, %c0_9, %c0_10] : memref<2x256x9xf32, #tpu.memory_space<vmem>>, vector<1x256x8xf32>
    %13 = vector.shape_cast %12 : vector<1x256x8xf32> to vector<256x8xf32>
    %14 = vector.shape_cast %11 : vector<256x8xf32> to vector<1x256x8xf32>
    tpu.vector_store %arg3[%c1, %c0_9, %c0_10], %14 {strides = array<i32>} : memref<2x256x9xf32, #tpu.memory_space<vmem>>, vector<1x256x8xf32>,
    %c1_11 = arith.constant 1 : index
    %c0_12 = arith.constant 0 : index
    %c8_13 = arith.constant 8 : index
    %15 = vector.load %arg3[%c1_11, %c0_12, %c8_13] : memref<2x256x9xf32, #tpu.memory_space<vmem>>, vector<1x256x1xf32>
    %16 = vector.shape_cast %15 : vector<1x256x1xf32> to vector<256x1xf32>
    %17 = vector.shape_cast %3 : vector<256x1xf32> to vector<1x256x1xf32>
    tpu.vector_store %arg3[%c1_11, %c0_12, %c8_13], %17 {strides = array<i32>} : memref<2x256x9xf32, #tpu.memory_space<vmem>>, vector<1x256x1xf32>,
    %18 = vector.extract_strided_slice %2 {offsets = [0, 16], sizes = [256, 2], strides = [1, 1]} : vector<256x20xf32> to vector<256x2xf32>
    %c0_14 = arith.constant 0 : index
    %c0_15 = arith.constant 0 : index
    %19 = vector.load %arg4[%c0_14, %c0_15] : memref<256x2xf32, #tpu.memory_space<vmem>>, vector<256x2xf32>
    tpu.vector_store %arg4[%c0_14, %c0_15], %18 {strides = array<i32>} : memref<256x2xf32, #tpu.memory_space<vmem>>, vector<256x2xf32>,
    %20 = vector.extract_strided_slice %2 {offsets = [0, 18], sizes = [256, 2], strides = [1, 1]} : vector<256x20xf32> to vector<256x2xf32>
    %c0_16 = arith.constant 0 : index
    %c0_17 = arith.constant 0 : index
    %21 = vector.load %arg5[%c0_16, %c0_17] : memref<256x2xf32, #tpu.memory_space<vmem>>, vector<256x2xf32>
    tpu.vector_store %arg5[%c0_16, %c0_17], %20 {strides = array<i32>} : memref<256x2xf32, #tpu.memory_space<vmem>>, vector<256x2xf32>,
    return
  }
  func.func @transform_0(%arg0: i32) -> (i32, i32) {
    %c0_i32 = arith.constant 0 : i32
    %c0_i32_0 = arith.constant 0 : i32
    return %arg0, %c0_i32 : i32, i32
  }
  func.func @transform_1(%arg0: i32) -> (i32, i32) {
    %c0_i32 = arith.constant 0 : i32
    %c0_i32_0 = arith.constant 0 : i32
    %c0_i32_1 = arith.constant 0 : i32
    return %c0_i32, %c0_i32_0 : i32, i32
  }
  func.func @transform_2(%arg0: i32) -> (i32, i32, i32) {
    %c0_i32 = arith.constant 0 : i32
    %c0_i32_0 = arith.constant 0 : i32
    %c0_i32_1 = arith.constant 0 : i32
    return %c0_i32, %arg0, %c0_i32_0 : i32, i32, i32
  }
  func.func @transform_3(%arg0: i32) -> (i32, i32) {
    %c0_i32 = arith.constant 0 : i32
    %c0_i32_0 = arith.constant 0 : i32
    return %arg0, %c0_i32 : i32, i32
  }
  func.func @transform_4(%arg0: i32) -> (i32, i32) {
    %c0_i32 = arith.constant 0 : i32
    %c0_i32_0 = arith.constant 0 : i32
    return %arg0, %c0_i32 : i32, i32
  }
}

</mosaic_0001>

<llo_original>
// kernel: tpu_custom_call.1
$region0: #{tpu_custom_call.1}
  #allocation0 [shape = 'u32[]', space=smem, size = 0x4, offset = 0x4, fixed_abs, tag = 'smem constant byte address 0x4 - core index']
  #allocation1 [shape = 'u32[144,128]{1,0:T(1,128)}', space=vmem, size = 0x12000, scoped, tag = 'internal scratch']
  %s0 = inlined_call_operand.vmem [shape: f32[512,16], index: 0, kind: input, shape index: {}]
  %s1 = inlined_call_operand.vmem [shape: f32[16,20], index: 1, kind: input, shape index: {}]
  %s2 = inlined_call_operand.vmem [shape: f32[2,512,9], index: 2, kind: output, shape index: {0}]
  %s3 = inlined_call_operand.vmem [shape: f32[512,2], index: 3, kind: output, shape index: {1}]
  %s4 = inlined_call_operand.vmem [shape: f32[512,2], index: 4, kind: output, shape index: {2}]
  %5 = xla_tuple %s2, %s3, %s4
  %s6 = sld [smem:[#allocation0]]
  $region91: #{tpu_custom_call.1} parent=0
    _
  %s8 = ssub.s32 1, %s6
  %s9 = scalar_select 0, %s8, %s6
  $region1: #{tpu_custom_call.1} parent=0
    #allocation2 [shape = 'u8[524288]{0}', space=vmem, size = 0x80000, scoped, tag = 'output window, operand 0']
    loop: start=0, step=1, limit=4
    $region2: #{tpu_custom_call.1} parent=1 // loop_pre_header
      _
    $region3: #{tpu_custom_call.1} parent=1 // loop_header
      %s11 = sphi 0, %s15
      %p12 = scmp.ge.s32.totalorder %s11, 4
      %s21 = sphi 0, %s23
      %s24 = sphi 0, %s21
      %s25 = sphi 0, %s24
      %s41 = sphi 0, %s25
      %s45 = sphi 0, %s45
      %s47 = sphi 0, %s45
      %s48 = sphi 0, %s47
      %s62 = sphi 0, %s48
      %s68 = sphi 0, %s70
      %s71 = sphi 0, %s68
      %s72 = sphi 0, %s71
      %s88 = sphi 0, %s72
      %s94 = sphi 0, %s96
      %s97 = sphi 0, %s94
      %s98 = sphi 0, %s97
      %s114 = sphi 0, %s98
      %s120 = sphi 0, %s122
      %s123 = sphi 0, %s120
      %s124 = sphi 0, %s123
      %s140 = sphi 0, %s124
    $region4: #{tpu_custom_call.1} parent=1 // loop_header_branch
      %14 = sbr.rel (%p12) target = $region8
    $region5: #{tpu_custom_call.1} parent=1 // loop_body
      %s16 = ssub.s32 %s11, 1
      %s17 = ssub.s32 %s11, 2
      %s18 = sadd.s32 %s11, 1
      %s19 = ssub.s32 %s11, %s18
      %p20 = scmp.eq.s32.totalorder %s19, 0
      %s22 = sadd.s32 %s21, 1
      %s23 = scalar_select %p20, %s21, %s22
      %p26 = pneg %p20
      %p27 = scmp.eq.s32.totalorder %s11, 1
      %p28 = por %p26, %p27
      %p29 = scmp.ne.s32.totalorder %s21, %s24
      %p30 = scmp.eq.s32.totalorder %s11, 0
      %p31 = por %p29, %p30
      %p32 = scmp.ne.s32.totalorder %s21, %s24
      %p33 = scmp.eq.s32.totalorder %s16, 1
      %p34 = por %p32, %p33
      %p35 = scmp.ne.s32.totalorder %s24, %s25
      %p36 = scmp.eq.s32.totalorder %s16, 0
      %p37 = por %p35, %p36
      %p38 = scmp.ne.s32.totalorder %s24, %s25
      %p39 = scmp.eq.s32.totalorder %s17, 1
      %p40 = por %p38, %p39
      %p42 = scmp.ne.s32.totalorder %s25, %s41
      %p43 = scmp.eq.s32.totalorder %s17, 0
      %p44 = por %p42, %p43
      %s46 = sadd.s32 %s45, 1
      %p49 = scmp.eq.s32.totalorder %s11, 1
      %p50 = scmp.ne.s32.totalorder %s45, %s47
      %p51 = scmp.eq.s32.totalorder %s11, 0
      %p52 = por %p50, %p51
      %p53 = scmp.ne.s32.totalorder %s45, %s47
      %p54 = scmp.eq.s32.totalorder %s16, 1
      %p55 = por %p53, %p54
      %p56 = scmp.ne.s32.totalorder %s47, %s48
      %p57 = scmp.eq.s32.totalorder %s16, 0
      %p58 = por %p56, %p57
      %p59 = scmp.ne.s32.totalorder %s47, %s48
      %p60 = scmp.eq.s32.totalorder %s17, 1
      %p61 = por %p59, %p60
      %p63 = scmp.ne.s32.totalorder %s48, %s62
      %p64 = scmp.eq.s32.totalorder %s17, 0
      %p65 = por %p63, %p64
      %s66 = ssub.s32 %s11, %s18
      %p67 = scmp.eq.s32.totalorder %s66, 0
      %s69 = sadd.s32 %s68, 1
      %s70 = scalar_select %p67, %s68, %s69
      %p73 = pneg %p67
      %p74 = scmp.eq.s32.totalorder %s11, 1
      %p75 = por %p73, %p74
      %p76 = scmp.ne.s32.totalorder %s68, %s71
      %p77 = scmp.eq.s32.totalorder %s11, 0
      %p78 = por %p76, %p77
      %p79 = scmp.ne.s32.totalorder %s68, %s71
      %p80 = scmp.eq.s32.totalorder %s16, 1
      %p81 = por %p79, %p80
      %p82 = scmp.ne.s32.totalorder %s71, %s72
      %p83 = scmp.eq.s32.totalorder %s16, 0
      %p84 = por %p82, %p83
      %p85 = scmp.ne.s32.totalorder %s71, %s72
      %p86 = scmp.eq.s32.totalorder %s17, 1
      %p87 = por %p85, %p86
      %p89 = scmp.ne.s32.totalorder %s72, %s88
      %p90 = scmp.eq.s32.totalorder %s17, 0
      %p91 = por %p89, %p90
      %s92 = ssub.s32 %s11, %s18
      %p93 = scmp.eq.s32.totalorder %s92, 0
      %s95 = sadd.s32 %s94, 1
      %s96 = scalar_select %p93, %s94, %s95
      %p99 = pneg %p93
      %p100 = scmp.eq.s32.totalorder %s11, 1
      %p101 = por %p99, %p100
      %p102 = scmp.ne.s32.totalorder %s94, %s97
      %p103 = scmp.eq.s32.totalorder %s11, 0
      %p104 = por %p102, %p103
      %p105 = scmp.ne.s32.totalorder %s94, %s97
      %p106 = scmp.eq.s32.totalorder %s16, 1
      %p107 = por %p105, %p106
      %p108 = scmp.ne.s32.totalorder %s97, %s98
      %p109 = scmp.eq.s32.totalorder %s16, 0
      %p110 = por %p108, %p109
      %p111 = scmp.ne.s32.totalorder %s97, %s98
      %p112 = scmp.eq.s32.totalorder %s17, 1
      %p113 = por %p111, %p112
      %p115 = scmp.ne.s32.totalorder %s98, %s114
      %p116 = scmp.eq.s32.totalorder %s17, 0
      %p117 = por %p115, %p116
      %s118 = ssub.s32 %s11, %s18
      %p119 = scmp.eq.s32.totalorder %s118, 0
      %s121 = sadd.s32 %s120, 1
      %s122 = scalar_select %p119, %s120, %s121
      %p125 = pneg %p119
      %p126 = scmp.eq.s32.totalorder %s11, 1
      %p127 = por %p125, %p126
      %p128 = scmp.ne.s32.totalorder %s120, %s123
      %p129 = scmp.eq.s32.totalorder %s11, 0
      %p130 = por %p128, %p129
      %p131 = scmp.ne.s32.totalorder %s120, %s123
      %p132 = scmp.eq.s32.totalorder %s16, 1
      %p133 = por %p131, %p132
      %p134 = scmp.ne.s32.totalorder %s123, %s124
      %p135 = scmp.eq.s32.totalorder %s16, 0
      %p136 = por %p134, %p135
      %p137 = scmp.ne.s32.totalorder %s123, %s124
      %p138 = scmp.eq.s32.totalorder %s17, 1
      %p139 = por %p137, %p138
      %p141 = scmp.ne.s32.totalorder %s124, %s140
      %p142 = scmp.eq.s32.totalorder %s17, 0
      %p143 = por %p141, %p142
      %p144 = scmp.le.s32.totalorder 1, %s11
      %p145 = scmp.lt.s32.totalorder %s11, 3
      %p146 = pnand %p144, %p145
      %p147 = pneg %p146
      // Predicated region
      $region9: #{tpu_custom_call.1} parent=5 // pred_check
        _
      $region10: #{tpu_custom_call.1} parent=5 // pred_check_branch
        %149 = sbr.rel (%p146) target = $region12
      $region11: #{tpu_custom_call.1} parent=5 // pred_region
        %s150 = ssub.s32 %s11, 1
        // Predicated region
        $region13: #{tpu_custom_call.1} parent=11 // pred_check
          %p151 = pneg %p58
        $region14: #{tpu_custom_call.1} parent=11 // pred_check_branch
          %153 = sbr.rel (%p151) target = $region16
        $region15: #{tpu_custom_call.1} parent=11 // pred_region
          _
        $region16: #{tpu_custom_call.1} parent=11 // pred_fallthru
          _
      $region12: #{tpu_custom_call.1} parent=5 // pred_fallthru
        _
      %p154 = scmp.lt.s32.totalorder %s11, 2
      // Predicated region
      $region17: #{tpu_custom_call.1} parent=5 // pred_check
        %p155 = pneg %p154
      $region18: #{tpu_custom_call.1} parent=5 // pred_check_branch
        %157 = sbr.rel (%p155) target = $region20
      $region19: #{tpu_custom_call.1} parent=5 // pred_region
        // Predicated region
        $region21: #{tpu_custom_call.1} parent=19 // pred_check
          %p158 = pneg %p31
        $region22: #{tpu_custom_call.1} parent=19 // pred_check_branch
          %160 = sbr.rel (%p158) target = $region24
        $region23: #{tpu_custom_call.1} parent=19 // pred_region
          %s161 = smul.u32 32, %s11
          %p162 = scmp.lt.s32.totalorder %s161, 63
          %s163 = scalar_select %p162, %s161, 63
          %s164 = smul.addr %s163, 8
          %s165 = scalar_lea.vmem %s0, %s164
          %s166 = smul.u32 32, %s11
        $region24: #{tpu_custom_call.1} parent=19 // pred_fallthru
          _
      $region20: #{tpu_custom_call.1} parent=5 // pred_fallthru
        _
      %p167 = scmp.le.s32.totalorder 1, %s11
      %p168 = scmp.lt.s32.totalorder %s11, 3
      %p169 = pnand %p167, %p168
      %p170 = pneg %p169
      // Predicated region
      $region25: #{tpu_custom_call.1} parent=5 // pred_check
        _
      $region26: #{tpu_custom_call.1} parent=5 // pred_check_branch
        %172 = sbr.rel (%p169) target = $region28
      $region27: #{tpu_custom_call.1} parent=5 // pred_region
        %s173 = ssub.s32 %s11, 1
        %s174 = smul.u32 32, %s16
        %p175 = scmp.lt.s32.totalorder %s174, 63
        %s176 = scalar_select %p175, %s174, 63
        %s177 = smul.addr %s176, 8
        %s178 = scalar_lea.vmem %s0, %s177
        %p179 = pneg %p37
        %p180 = pneg %p34
        %p181 = pneg %p58
        %p182 = pneg %p55
        %p183 = pneg %p84
        %p184 = pneg %p81
        %s185 = sand.u32 %s71, 1
        %s186 = sand.u32 %s71, 1
        %s187 = smul.addr %s186, 512
        %s188 = scalar_lea.vmem [#allocation2], %s187
        %p189 = pneg %p110
        %p190 = pneg %p107
        %s191 = smul.u32 32, %s16
        %p192 = scmp.lt.s32.totalorder %s191, 63
        %s193 = scalar_select %p192, %s191, 63
        %s194 = smul.addr %s193, 8
        %s195 = scalar_lea.vmem %s3, %s194
        %p196 = pneg %p136
        %p197 = pneg %p133
        %s198 = smul.u32 32, %s16
        %p199 = scmp.lt.s32.totalorder %s198, 63
        %s200 = scalar_select %p199, %s198, 63
        %s201 = smul.addr %s200, 8
        %s202 = scalar_lea.vmem %s4, %s201
        %s203 = smul.u32 32, %s16
        %p204 = scmp.lt.s32.totalorder %s203, 63
        %s205 = scalar_select %p204, %s203, 63
        %s206 = smul.addr %s205, 8
        %s207 = scalar_lea.vmem %s0, %s206
        %s208 = smul.u32 32, %s16
        %s209 = smul.u32 32, %s16
        %s210 = smul.u32 32, %s16
        %p211 = scmp.lt.s32.totalorder %s210, 63
        %s212 = scalar_select %p211, %s210, 63
        %s213 = smul.addr %s212, 8
        %s214 = scalar_lea.vmem %s3, %s213
        %s215 = smul.u32 32, %s16
        %s216 = smul.u32 32, %s16
        %p217 = scmp.lt.s32.totalorder %s216, 63
        %s218 = scalar_select %p217, %s216, 63
        %s219 = smul.addr %s218, 8
        %s220 = scalar_lea.vmem %s4, %s219
        %s221 = smul.u32 32, %s16
        %v222 = vld [vmem:[%s207] sm:$0xff]
        %v223 = vld [vmem:[%s207 + $0x8] sm:$0xff]
        %v224 = vld [vmem:[%s207 + $0x10] sm:$0xff]
        %v225 = vld [vmem:[%s207 + $0x18] sm:$0xff]
        %v226 = vld [vmem:[%s207 + $0x20] sm:$0xff]
        %v227 = vld [vmem:[%s207 + $0x28] sm:$0xff]
        %v228 = vld [vmem:[%s207 + $0x30] sm:$0xff]
        %v229 = vld [vmem:[%s207 + $0x38] sm:$0xff]
        %v230 = vld [vmem:[%s207 + $0x40] sm:$0xff]
        %v231 = vld [vmem:[%s207 + $0x48] sm:$0xff]
        %v232 = vld [vmem:[%s207 + $0x50] sm:$0xff]
        %v233 = vld [vmem:[%s207 + $0x58] sm:$0xff]
        %v234 = vld [vmem:[%s207 + $0x60] sm:$0xff]
        %v235 = vld [vmem:[%s207 + $0x68] sm:$0xff]
        %v236 = vld [vmem:[%s207 + $0x70] sm:$0xff]
        %v237 = vld [vmem:[%s207 + $0x78] sm:$0xff]
        %v238 = vld [vmem:[%s207 + $0x80] sm:$0xff]
        %v239 = vld [vmem:[%s207 + $0x88] sm:$0xff]
        %v240 = vld [vmem:[%s207 + $0x90] sm:$0xff]
        %v241 = vld [vmem:[%s207 + $0x98] sm:$0xff]
        %v242 = vld [vmem:[%s207 + $0xa0] sm:$0xff]
        %v243 = vld [vmem:[%s207 + $0xa8] sm:$0xff]
        %v244 = vld [vmem:[%s207 + $0xb0] sm:$0xff]
        %v245 = vld [vmem:[%s207 + $0xb8] sm:$0xff]
        %v246 = vld [vmem:[%s207 + $0xc0] sm:$0xff]
        %v247 = vld [vmem:[%s207 + $0xc8] sm:$0xff]
        %v248 = vld [vmem:[%s207 + $0xd0] sm:$0xff]
        %v249 = vld [vmem:[%s207 + $0xd8] sm:$0xff]
        %v250 = vld [vmem:[%s207 + $0xe0] sm:$0xff]
        %v251 = vld [vmem:[%s207 + $0xe8] sm:$0xff]
        %v252 = vld [vmem:[%s207 + $0xf0] sm:$0xff]
        %v253 = vld [vmem:[%s207 + $0xf8] sm:$0xff]
        %v254 = vld [vmem:[%s1] sm:$0xff]
        %v255 = vld [vmem:[%s1 + $0x8] sm:$0xff]
        %vm256 = vcmask 130048
        %v258 = vsel %vm256, %v222, 0
        %v261 = vsel %vm256, %v223, 0
        %v264 = vsel %vm256, %v224, 0
        %v267 = vsel %vm256, %v225, 0
        %v270 = vsel %vm256, %v226, 0
        %v273 = vsel %vm256, %v227, 0
        %v276 = vsel %vm256, %v228, 0
        %v279 = vsel %vm256, %v229, 0
        %v282 = vsel %vm256, %v230, 0
        %v285 = vsel %vm256, %v231, 0
        %v288 = vsel %vm256, %v232, 0
        %v291 = vsel %vm256, %v233, 0
        %v294 = vsel %vm256, %v234, 0
        %v297 = vsel %vm256, %v235, 0
        %v300 = vsel %vm256, %v236, 0
        %v303 = vsel %vm256, %v237, 0
        %v306 = vsel %vm256, %v238, 0
        %v309 = vsel %vm256, %v239, 0
        %v312 = vsel %vm256, %v240, 0
        %v315 = vsel %vm256, %v241, 0
        %v318 = vsel %vm256, %v242, 0
        %v321 = vsel %vm256, %v243, 0
        %v324 = vsel %vm256, %v244, 0
        %v327 = vsel %vm256, %v245, 0
        %v330 = vsel %vm256, %v246, 0
        %v333 = vsel %vm256, %v247, 0
        %v336 = vsel %vm256, %v248, 0
        %v339 = vsel %vm256, %v249, 0
        %v342 = vsel %vm256, %v250, 0
        %v345 = vsel %vm256, %v251, 0
        %v348 = vsel %vm256, %v252, 0
        %v351 = vsel %vm256, %v253, 0
        %353 = vmatprep.subr.mxu0 0.0
        %354 = vmatpush1.msra.mxu0 %v254
        %355 = vmatprep.subr.mxu0 0.0
        %356 = vmatpush1.msra.mxu0 %v255
        %357 = vmatprep.subr.mxu0 0.0
        %358 = vmatpush1.msra.mxu0 0.0
        %359 = vmatprep.subr.mxu0 0.0
        %360 = vmatpush1.msra.mxu0 0.0
        %361 = vmatprep.subr.mxu0 0.0
        %362 = vmatpush1.msra.mxu0 0.0
        %363 = vmatprep.subr.mxu0 0.0
        %364 = vmatpush1.msra.mxu0 0.0
        %365 = vmatprep.subr.mxu0 0.0
        %366 = vmatpush1.msra.mxu0 0.0
        %367 = vmatprep.subr.mxu0 0.0
        %368 = vmatpush1.msra.mxu0 0.0
        %369 = vmatprep.subr.mxu0 0.0
        %370 = vmatpush1.msra.mxu0 0.0
        %371 = vmatprep.subr.mxu0 0.0
        %372 = vmatpush1.msra.mxu0 0.0
        %373 = vmatprep.subr.mxu0 0.0
        %374 = vmatpush1.msra.mxu0 0.0
        %375 = vmatprep.subr.mxu0 0.0
        %376 = vmatpush1.msra.mxu0 0.0
        %377 = vmatprep.subr.mxu0 0.0
        %378 = vmatpush1.msra.mxu0 0.0
        %379 = vmatprep.subr.mxu0 0.0
        %380 = vmatpush1.msra.mxu0 0.0
        %381 = vmatprep.subr.mxu0 0.0
        %382 = vmatpush1.msra.mxu0 0.0
        %383 = vmatprep.subr.mxu0 0.0
        %384 = vmatpush1.msra.mxu0 0.0
        %385 = vmatprep.subr.mxu0 0.0
        %386 = vmatpush1.msra.mxu0 0.0
        %387 = vmatprep.subr.mxu0 0.0
        %388 = vmatpush1.msra.mxu0 0.0
        %389 = vmatprep.subr.mxu0 0.0
        %390 = vmatpush1.msra.mxu0 0.0
        %391 = vmatprep.subr.mxu0 0.0
        %392 = vmatpush1.msra.mxu0 0.0
        %393 = vmatprep.subr.mxu0 0.0
        %394 = vmatpush1.msra.mxu0 0.0
        %395 = vmatprep.subr.mxu0 0.0
        %396 = vmatpush1.msra.mxu0 0.0
        %397 = vmatprep.subr.mxu0 0.0
        %398 = vmatpush1.msra.mxu0 0.0
        %399 = vmatprep.subr.mxu0 0.0
        %400 = vmatpush1.msra.mxu0 0.0
        %401 = vmatprep.subr.mxu0 0.0
        %402 = vmatpush1.msra.mxu0 0.0
        %403 = vmatprep.subr.mxu0 0.0
        %404 = vmatpush1.msra.mxu0 0.0
        %405 = vmatprep.subr.mxu0 0.0
        %406 = vmatpush1.msra.mxu0 0.0
        %407 = vmatprep.subr.mxu0 0.0
        %408 = vmatpush1.msra.mxu0 0.0
        %409 = vmatprep.subr.mxu0 0.0
        %410 = vmatpush1.msra.mxu0 0.0
        %411 = vmatprep.subr.mxu0 0.0
        %412 = vmatpush1.msra.mxu0 0.0
        %413 = vmatprep.subr.mxu0 0.0
        %414 = vmatpush1.msra.mxu0 0.0
        %415 = vmatprep.subr.mxu0 0.0
        %416 = vmatpush1.msra.mxu0 0.0
        %417 = vmatprep.mubr.f32.mxu0 0.0
        %418 = vmatmul.mubr.f32.gmra.mrb[0].mxu0 %v258
        %v419 = vpop.f32.mrb[0].mxu0
        %v420 = vadd.f32 0.0, %v419
        %v421 = vpop.f32.mrb[0].mxu0
        %422 = vmatprep.mubr.f32.mxu0 0.0
        %423 = vmatmul.mubr.f32.gmra.mrb[0].mxu0 %v261
        %v424 = vpop.f32.mrb[0].mxu0
        %v425 = vadd.f32 0.0, %v424
        %v426 = vpop.f32.mrb[0].mxu0
        %427 = vmatprep.mubr.f32.mxu0 0.0
        %428 = vmatmul.mubr.f32.gmra.mrb[0].mxu0 %v264
        %v429 = vpop.f32.mrb[0].mxu0
        %v430 = vadd.f32 0.0, %v429
        %v431 = vpop.f32.mrb[0].mxu0
        %432 = vmatprep.mubr.f32.mxu0 0.0
        %433 = vmatmul.mubr.f32.gmra.mrb[0].mxu0 %v267
        %v434 = vpop.f32.mrb[0].mxu0
        %v435 = vadd.f32 0.0, %v434
        %v436 = vpop.f32.mrb[0].mxu0
        %437 = vmatprep.mubr.f32.mxu0 0.0
        %438 = vmatmul.mubr.f32.gmra.mrb[0].mxu0 %v270
        %v439 = vpop.f32.mrb[0].mxu0
        %v440 = vadd.f32 0.0, %v439
        %v441 = vpop.f32.mrb[0].mxu0
        %442 = vmatprep.mubr.f32.mxu0 0.0
        %443 = vmatmul.mubr.f32.gmra.mrb[0].mxu0 %v273
        %v444 = vpop.f32.mrb[0].mxu0
        %v445 = vadd.f32 0.0, %v444
        %v446 = vpop.f32.mrb[0].mxu0
        %447 = vmatprep.mubr.f32.mxu0 0.0
        %448 = vmatmul.mubr.f32.gmra.mrb[0].mxu0 %v276
        %v449 = vpop.f32.mrb[0].mxu0
        %v450 = vadd.f32 0.0, %v449
        %v451 = vpop.f32.mrb[0].mxu0
        %452 = vmatprep.mubr.f32.mxu0 0.0
        %453 = vmatmul.mubr.f32.gmra.mrb[0].mxu0 %v279
        %v454 = vpop.f32.mrb[0].mxu0
        %v455 = vadd.f32 0.0, %v454
        %v456 = vpop.f32.mrb[0].mxu0
        %457 = vmatprep.mubr.f32.mxu0 0.0
        %458 = vmatmul.mubr.f32.gmra.mrb[0].mxu0 %v282
        %v459 = vpop.f32.mrb[0].mxu0
        %v460 = vadd.f32 0.0, %v459
        %v461 = vpop.f32.mrb[0].mxu0
        %462 = vmatprep.mubr.f32.mxu0 0.0
        %463 = vmatmul.mubr.f32.gmra.mrb[0].mxu0 %v285
        %v464 = vpop.f32.mrb[0].mxu0
        %v465 = vadd.f32 0.0, %v464
        %v466 = vpop.f32.mrb[0].mxu0
        %467 = vmatprep.mubr.f32.mxu0 0.0
        %468 = vmatmul.mubr.f32.gmra.mrb[0].mxu0 %v288
        %v469 = vpop.f32.mrb[0].mxu0
        %v470 = vadd.f32 0.0, %v469
        %v471 = vpop.f32.mrb[0].mxu0
        %472 = vmatprep.mubr.f32.mxu0 0.0
        %473 = vmatmul.mubr.f32.gmra.mrb[0].mxu0 %v291
        %v474 = vpop.f32.mrb[0].mxu0
        %v475 = vadd.f32 0.0, %v474
        %v476 = vpop.f32.mrb[0].mxu0
        %477 = vmatprep.mubr.f32.mxu0 0.0
        %478 = vmatmul.mubr.f32.gmra.mrb[0].mxu0 %v294
        %v479 = vpop.f32.mrb[0].mxu0
        %v480 = vadd.f32 0.0, %v479
        %v481 = vpop.f32.mrb[0].mxu0
        %482 = vmatprep.mubr.f32.mxu0 0.0
        %483 = vmatmul.mubr.f32.gmra.mrb[0].mxu0 %v297
        %v484 = vpop.f32.mrb[0].mxu0
        %v485 = vadd.f32 0.0, %v484
        %v486 = vpop.f32.mrb[0].mxu0
        %487 = vmatprep.mubr.f32.mxu0 0.0
        %488 = vmatmul.mubr.f32.gmra.mrb[0].mxu0 %v300
        %v489 = vpop.f32.mrb[0].mxu0
        %v490 = vadd.f32 0.0, %v489
        %v491 = vpop.f32.mrb[0].mxu0
        %492 = vmatprep.mubr.f32.mxu0 0.0
        %493 = vmatmul.mubr.f32.gmra.mrb[0].mxu0 %v303
        %v494 = vpop.f32.mrb[0].mxu0
        %v495 = vadd.f32 0.0, %v494
        %v496 = vpop.f32.mrb[0].mxu0
        %497 = vmatprep.mubr.f32.mxu0 0.0
        %498 = vmatmul.mubr.f32.gmra.mrb[0].mxu0 %v306
        %v499 = vpop.f32.mrb[0].mxu0
        %v500 = vadd.f32 0.0, %v499
        %v501 = vpop.f32.mrb[0].mxu0
        %502 = vmatprep.mubr.f32.mxu0 0.0
        %503 = vmatmul.mubr.f32.gmra.mrb[0].mxu0 %v309
        %v504 = vpop.f32.mrb[0].mxu0
        %v505 = vadd.f32 0.0, %v504
        %v506 = vpop.f32.mrb[0].mxu0
        %507 = vmatprep.mubr.f32.mxu0 0.0
        %508 = vmatmul.mubr.f32.gmra.mrb[0].mxu0 %v312
        %v509 = vpop.f32.mrb[0].mxu0
        %v510 = vadd.f32 0.0, %v509
        %v511 = vpop.f32.mrb[0].mxu0
        %512 = vmatprep.mubr.f32.mxu0 0.0
        %513 = vmatmul.mubr.f32.gmra.mrb[0].mxu0 %v315
        %v514 = vpop.f32.mrb[0].mxu0
        %v515 = vadd.f32 0.0, %v514
        %v516 = vpop.f32.mrb[0].mxu0
        %517 = vmatprep.mubr.f32.mxu0 0.0
        %518 = vmatmul.mubr.f32.gmra.mrb[0].mxu0 %v318
        %v519 = vpop.f32.mrb[0].mxu0
        %v520 = vadd.f32 0.0, %v519
        %v521 = vpop.f32.mrb[0].mxu0
        %522 = vmatprep.mubr.f32.mxu0 0.0
        %523 = vmatmul.mubr.f32.gmra.mrb[0].mxu0 %v321
        %v524 = vpop.f32.mrb[0].mxu0
        %v525 = vadd.f32 0.0, %v524
        %v526 = vpop.f32.mrb[0].mxu0
        %527 = vmatprep.mubr.f32.mxu0 0.0
        %528 = vmatmul.mubr.f32.gmra.mrb[0].mxu0 %v324
        %v529 = vpop.f32.mrb[0].mxu0
        %v530 = vadd.f32 0.0, %v529
        %v531 = vpop.f32.mrb[0].mxu0
        %532 = vmatprep.mubr.f32.mxu0 0.0
        %533 = vmatmul.mubr.f32.gmra.mrb[0].mxu0 %v327
        %v534 = vpop.f32.mrb[0].mxu0
        %v535 = vadd.f32 0.0, %v534
        %v536 = vpop.f32.mrb[0].mxu0
        %537 = vmatprep.mubr.f32.mxu0 0.0
        %538 = vmatmul.mubr.f32.gmra.mrb[0].mxu0 %v330
        %v539 = vpop.f32.mrb[0].mxu0
        %v540 = vadd.f32 0.0, %v539
        %v541 = vpop.f32.mrb[0].mxu0
        %542 = vmatprep.mubr.f32.mxu0 0.0
        %543 = vmatmul.mubr.f32.gmra.mrb[0].mxu0 %v333
        %v544 = vpop.f32.mrb[0].mxu0
        %v545 = vadd.f32 0.0, %v544
        %v546 = vpop.f32.mrb[0].mxu0
        %547 = vmatprep.mubr.f32.mxu0 0.0
        %548 = vmatmul.mubr.f32.gmra.mrb[0].mxu0 %v336
        %v549 = vpop.f32.mrb[0].mxu0
        %v550 = vadd.f32 0.0, %v549
        %v551 = vpop.f32.mrb[0].mxu0
        %552 = vmatprep.mubr.f32.mxu0 0.0
        %553 = vmatmul.mubr.f32.gmra.mrb[0].mxu0 %v339
        %v554 = vpop.f32.mrb[0].mxu0
        %v555 = vadd.f32 0.0, %v554
        %v556 = vpop.f32.mrb[0].mxu0
        %557 = vmatprep.mubr.f32.mxu0 0.0
        %558 = vmatmul.mubr.f32.gmra.mrb[0].mxu0 %v342
        %v559 = vpop.f32.mrb[0].mxu0
        %v560 = vadd.f32 0.0, %v559
        %v561 = vpop.f32.mrb[0].mxu0
        %562 = vmatprep.mubr.f32.mxu0 0.0
        %563 = vmatmul.mubr.f32.gmra.mrb[0].mxu0 %v345
        %v564 = vpop.f32.mrb[0].mxu0
        %v565 = vadd.f32 0.0, %v564
        %v566 = vpop.f32.mrb[0].mxu0
        %567 = vmatprep.mubr.f32.mxu0 0.0
        %568 = vmatmul.mubr.f32.gmra.mrb[0].mxu0 %v348
        %v569 = vpop.f32.mrb[0].mxu0
        %v570 = vadd.f32 0.0, %v569
        %v571 = vpop.f32.mrb[0].mxu0
        %572 = vmatprep.mubr.f32.mxu0 0.0
        %573 = vmatmul.mubr.f32.gmra.mrb[0].mxu0 %v351
        %v574 = vpop.f32.mrb[0].mxu0
        %v575 = vadd.f32 0.0, %v574
        %v576 = vpop.f32.mrb[0].mxu0
        %577 = vdwg.mxu0
        %vm578 = vcmask 64512
        %579 = vst.msk [vmem:[%s188] sm:$0xff] %vm578, %v420
        %580 = vst.msk [vmem:[%s188 + $0x8] sm:$0xff] %vm578, %v425
        %581 = vst.msk [vmem:[%s188 + $0x10] sm:$0xff] %vm578, %v430
        %582 = vst.msk [vmem:[%s188 + $0x18] sm:$0xff] %vm578, %v435
        %583 = vst.msk [vmem:[%s188 + $0x20] sm:$0xff] %vm578, %v440
        %584 = vst.msk [vmem:[%s188 + $0x28] sm:$0xff] %vm578, %v445
        %585 = vst.msk [vmem:[%s188 + $0x30] sm:$0xff] %vm578, %v450
        %586 = vst.msk [vmem:[%s188 + $0x38] sm:$0xff] %vm578, %v455
        %587 = vst.msk [vmem:[%s188 + $0x40] sm:$0xff] %vm578, %v460
        %588 = vst.msk [vmem:[%s188 + $0x48] sm:$0xff] %vm578, %v465
        %589 = vst.msk [vmem:[%s188 + $0x50] sm:$0xff] %vm578, %v470
        %590 = vst.msk [vmem:[%s188 + $0x58] sm:$0xff] %vm578, %v475
        %591 = vst.msk [vmem:[%s188 + $0x60] sm:$0xff] %vm578, %v480
        %592 = vst.msk [vmem:[%s188 + $0x68] sm:$0xff] %vm578, %v485
        %593 = vst.msk [vmem:[%s188 + $0x70] sm:$0xff] %vm578, %v490
        %594 = vst.msk [vmem:[%s188 + $0x78] sm:$0xff] %vm578, %v495
        %595 = vst.msk [vmem:[%s188 + $0x80] sm:$0xff] %vm578, %v500
        %596 = vst.msk [vmem:[%s188 + $0x88] sm:$0xff] %vm578, %v505
        %597 = vst.msk [vmem:[%s188 + $0x90] sm:$0xff] %vm578, %v510
        %598 = vst.msk [vmem:[%s188 + $0x98] sm:$0xff] %vm578, %v515
        %599 = vst.msk [vmem:[%s188 + $0xa0] sm:$0xff] %vm578, %v520
        %600 = vst.msk [vmem:[%s188 + $0xa8] sm:$0xff] %vm578, %v525
        %601 = vst.msk [vmem:[%s188 + $0xb0] sm:$0xff] %vm578, %v530
        %602 = vst.msk [vmem:[%s188 + $0xb8] sm:$0xff] %vm578, %v535
        %603 = vst.msk [vmem:[%s188 + $0xc0] sm:$0xff] %vm578, %v540
        %604 = vst.msk [vmem:[%s188 + $0xc8] sm:$0xff] %vm578, %v545
        %605 = vst.msk [vmem:[%s188 + $0xd0] sm:$0xff] %vm578, %v550
        %606 = vst.msk [vmem:[%s188 + $0xd8] sm:$0xff] %vm578, %v555
        %607 = vst.msk [vmem:[%s188 + $0xe0] sm:$0xff] %vm578, %v560
        %608 = vst.msk [vmem:[%s188 + $0xe8] sm:$0xff] %vm578, %v565
        %609 = vst.msk [vmem:[%s188 + $0xf0] sm:$0xff] %vm578, %v570
        %610 = vst.msk [vmem:[%s188 + $0xf8] sm:$0xff] %vm578, %v575
        %vm611 = vcmask 72768
        %612 = vst.msk [vmem:[%s188] sm:$0xff] %vm611, 1.0
        %613 = vst.msk [vmem:[%s188 + $0x8] sm:$0xff] %vm611, 1.0
        %614 = vst.msk [vmem:[%s188 + $0x10] sm:$0xff] %vm611, 1.0
        %615 = vst.msk [vmem:[%s188 + $0x18] sm:$0xff] %vm611, 1.0
        %616 = vst.msk [vmem:[%s188 + $0x20] sm:$0xff] %vm611, 1.0
        %617 = vst.msk [vmem:[%s188 + $0x28] sm:$0xff] %vm611, 1.0
        %618 = vst.msk [vmem:[%s188 + $0x30] sm:$0xff] %vm611, 1.0
        %619 = vst.msk [vmem:[%s188 + $0x38] sm:$0xff] %vm611, 1.0
        %620 = vst.msk [vmem:[%s188 + $0x40] sm:$0xff] %vm611, 1.0
        %621 = vst.msk [vmem:[%s188 + $0x48] sm:$0xff] %vm611, 1.0
        %622 = vst.msk [vmem:[%s188 + $0x50] sm:$0xff] %vm611, 1.0
        %623 = vst.msk [vmem:[%s188 + $0x58] sm:$0xff] %vm611, 1.0
        %624 = vst.msk [vmem:[%s188 + $0x60] sm:$0xff] %vm611, 1.0
        %625 = vst.msk [vmem:[%s188 + $0x68] sm:$0xff] %vm611, 1.0
        %626 = vst.msk [vmem:[%s188 + $0x70] sm:$0xff] %vm611, 1.0
        %627 = vst.msk [vmem:[%s188 + $0x78] sm:$0xff] %vm611, 1.0
        %628 = vst.msk [vmem:[%s188 + $0x80] sm:$0xff] %vm611, 1.0
        %629 = vst.msk [vmem:[%s188 + $0x88] sm:$0xff] %vm611, 1.0
        %630 = vst.msk [vmem:[%s188 + $0x90] sm:$0xff] %vm611, 1.0
        %631 = vst.msk [vmem:[%s188 + $0x98] sm:$0xff] %vm611, 1.0
        %632 = vst.msk [vmem:[%s188 + $0xa0] sm:$0xff] %vm611, 1.0
        %633 = vst.msk [vmem:[%s188 + $0xa8] sm:$0xff] %vm611, 1.0
        %634 = vst.msk [vmem:[%s188 + $0xb0] sm:$0xff] %vm611, 1.0
        %635 = vst.msk [vmem:[%s188 + $0xb8] sm:$0xff] %vm611, 1.0
        %636 = vst.msk [vmem:[%s188 + $0xc0] sm:$0xff] %vm611, 1.0
        %637 = vst.msk [vmem:[%s188 + $0xc8] sm:$0xff] %vm611, 1.0
        %638 = vst.msk [vmem:[%s188 + $0xd0] sm:$0xff] %vm611, 1.0
        %639 = vst.msk [vmem:[%s188 + $0xd8] sm:$0xff] %vm611, 1.0
        %640 = vst.msk [vmem:[%s188 + $0xe0] sm:$0xff] %vm611, 1.0
        %641 = vst.msk [vmem:[%s188 + $0xe8] sm:$0xff] %vm611, 1.0
        %642 = vst.msk [vmem:[%s188 + $0xf0] sm:$0xff] %vm611, 1.0
        %643 = vst.msk [vmem:[%s188 + $0xf8] sm:$0xff] %vm611, 1.0
        %676 = vrot.lane.b32.xlu0 %v420, 120
        %v677 = vpop.permute.xlu0 %676
        %678 = vrot.lane.b32.xlu0 %v425, 120
        %v679 = vpop.permute.xlu0 %678
        %680 = vrot.lane.b32.xlu0 %v430, 120
        %v681 = vpop.permute.xlu0 %680
        %682 = vrot.lane.b32.xlu0 %v435, 120
        %v683 = vpop.permute.xlu0 %682
        %684 = vrot.lane.b32.xlu0 %v440, 120
        %v685 = vpop.permute.xlu0 %684
        %686 = vrot.lane.b32.xlu0 %v445, 120
        %v687 = vpop.permute.xlu0 %686
        %688 = vrot.lane.b32.xlu0 %v450, 120
        %v689 = vpop.permute.xlu0 %688
        %690 = vrot.lane.b32.xlu0 %v455, 120
        %v691 = vpop.permute.xlu0 %690
        %692 = vrot.lane.b32.xlu0 %v460, 120
        %v693 = vpop.permute.xlu0 %692
        %694 = vrot.lane.b32.xlu0 %v465, 120
        %v695 = vpop.permute.xlu0 %694
        %696 = vrot.lane.b32.xlu0 %v470, 120
        %v697 = vpop.permute.xlu0 %696
        %698 = vrot.lane.b32.xlu0 %v475, 120
        %v699 = vpop.permute.xlu0 %698
        %700 = vrot.lane.b32.xlu0 %v480, 120
        %v701 = vpop.permute.xlu0 %700
        %702 = vrot.lane.b32.xlu0 %v485, 120
        %v703 = vpop.permute.xlu0 %702
        %704 = vrot.lane.b32.xlu0 %v490, 120
        %v705 = vpop.permute.xlu0 %704
        %706 = vrot.lane.b32.xlu0 %v495, 120
        %v707 = vpop.permute.xlu0 %706
        %708 = vrot.lane.b32.xlu0 %v500, 120
        %v709 = vpop.permute.xlu0 %708
        %710 = vrot.lane.b32.xlu0 %v505, 120
        %v711 = vpop.permute.xlu0 %710
        %712 = vrot.lane.b32.xlu0 %v510, 120
        %v713 = vpop.permute.xlu0 %712
        %714 = vrot.lane.b32.xlu0 %v515, 120
        %v715 = vpop.permute.xlu0 %714
        %716 = vrot.lane.b32.xlu0 %v520, 120
        %v717 = vpop.permute.xlu0 %716
        %718 = vrot.lane.b32.xlu0 %v525, 120
        %v719 = vpop.permute.xlu0 %718
        %720 = vrot.lane.b32.xlu0 %v530, 120
        %v721 = vpop.permute.xlu0 %720
        %722 = vrot.lane.b32.xlu0 %v535, 120
        %v723 = vpop.permute.xlu0 %722
        %724 = vrot.lane.b32.xlu0 %v540, 120
        %v725 = vpop.permute.xlu0 %724
        %726 = vrot.lane.b32.xlu0 %v545, 120
        %v727 = vpop.permute.xlu0 %726
        %728 = vrot.lane.b32.xlu0 %v550, 120
        %v729 = vpop.permute.xlu0 %728
        %730 = vrot.lane.b32.xlu0 %v555, 120
        %v731 = vpop.permute.xlu0 %730
        %732 = vrot.lane.b32.xlu0 %v560, 120
        %v733 = vpop.permute.xlu0 %732
        %734 = vrot.lane.b32.xlu0 %v565, 120
        %v735 = vpop.permute.xlu0 %734
        %736 = vrot.lane.b32.xlu0 %v570, 120
        %v737 = vpop.permute.xlu0 %736
        %738 = vrot.lane.b32.xlu0 %v575, 120
        %v739 = vpop.permute.xlu0 %738
        %s772 = scalar_lea.vmem %s188, 256 [#allocation2]
        %773 = vst.msk [vmem:[%s772] sm:$0xff] %vm578, %v677
        %774 = vst.msk [vmem:[%s772 + $0x8] sm:$0xff] %vm578, %v679
        %775 = vst.msk [vmem:[%s772 + $0x10] sm:$0xff] %vm578, %v681
        %776 = vst.msk [vmem:[%s772 + $0x18] sm:$0xff] %vm578, %v683
        %777 = vst.msk [vmem:[%s772 + $0x20] sm:$0xff] %vm578, %v685
        %778 = vst.msk [vmem:[%s772 + $0x28] sm:$0xff] %vm578, %v687
        %779 = vst.msk [vmem:[%s772 + $0x30] sm:$0xff] %vm578, %v689
        %780 = vst.msk [vmem:[%s772 + $0x38] sm:$0xff] %vm578, %v691
        %781 = vst.msk [vmem:[%s772 + $0x40] sm:$0xff] %vm578, %v693
        %782 = vst.msk [vmem:[%s772 + $0x48] sm:$0xff] %vm578, %v695
        %783 = vst.msk [vmem:[%s772 + $0x50] sm:$0xff] %vm578, %v697
        %784 = vst.msk [vmem:[%s772 + $0x58] sm:$0xff] %vm578, %v699
        %785 = vst.msk [vmem:[%s772 + $0x60] sm:$0xff] %vm578, %v701
        %786 = vst.msk [vmem:[%s772 + $0x68] sm:$0xff] %vm578, %v703
        %787 = vst.msk [vmem:[%s772 + $0x70] sm:$0xff] %vm578, %v705
        %788 = vst.msk [vmem:[%s772 + $0x78] sm:$0xff] %vm578, %v707
        %789 = vst.msk [vmem:[%s772 + $0x80] sm:$0xff] %vm578, %v709
        %790 = vst.msk [vmem:[%s772 + $0x88] sm:$0xff] %vm578, %v711
        %791 = vst.msk [vmem:[%s772 + $0x90] sm:$0xff] %vm578, %v713
        %792 = vst.msk [vmem:[%s772 + $0x98] sm:$0xff] %vm578, %v715
        %793 = vst.msk [vmem:[%s772 + $0xa0] sm:$0xff] %vm578, %v717
        %794 = vst.msk [vmem:[%s772 + $0xa8] sm:$0xff] %vm578, %v719
        %795 = vst.msk [vmem:[%s772 + $0xb0] sm:$0xff] %vm578, %v721
        %796 = vst.msk [vmem:[%s772 + $0xb8] sm:$0xff] %vm578, %v723
        %797 = vst.msk [vmem:[%s772 + $0xc0] sm:$0xff] %vm578, %v725
        %798 = vst.msk [vmem:[%s772 + $0xc8] sm:$0xff] %vm578, %v727
        %799 = vst.msk [vmem:[%s772 + $0xd0] sm:$0xff] %vm578, %v729
        %800 = vst.msk [vmem:[%s772 + $0xd8] sm:$0xff] %vm578, %v731
        %801 = vst.msk [vmem:[%s772 + $0xe0] sm:$0xff] %vm578, %v733
        %802 = vst.msk [vmem:[%s772 + $0xe8] sm:$0xff] %vm578, %v735
        %803 = vst.msk [vmem:[%s772 + $0xf0] sm:$0xff] %vm578, %v737
        %804 = vst.msk [vmem:[%s772 + $0xf8] sm:$0xff] %vm578, %v739
        %805 = vst.msk [vmem:[%s772] sm:$0xff] %vm611, 1.0
        %806 = vst.msk [vmem:[%s772 + $0x8] sm:$0xff] %vm611, 1.0
        %807 = vst.msk [vmem:[%s772 + $0x10] sm:$0xff] %vm611, 1.0
        %808 = vst.msk [vmem:[%s772 + $0x18] sm:$0xff] %vm611, 1.0
        %809 = vst.msk [vmem:[%s772 + $0x20] sm:$0xff] %vm611, 1.0
        %810 = vst.msk [vmem:[%s772 + $0x28] sm:$0xff] %vm611, 1.0
        %811 = vst.msk [vmem:[%s772 + $0x30] sm:$0xff] %vm611, 1.0
        %812 = vst.msk [vmem:[%s772 + $0x38] sm:$0xff] %vm611, 1.0
        %813 = vst.msk [vmem:[%s772 + $0x40] sm:$0xff] %vm611, 1.0
        %814 = vst.msk [vmem:[%s772 + $0x48] sm:$0xff] %vm611, 1.0
        %815 = vst.msk [vmem:[%s772 + $0x50] sm:$0xff] %vm611, 1.0
        %816 = vst.msk [vmem:[%s772 + $0x58] sm:$0xff] %vm611, 1.0
        %817 = vst.msk [vmem:[%s772 + $0x60] sm:$0xff] %vm611, 1.0
        %818 = vst.msk [vmem:[%s772 + $0x68] sm:$0xff] %vm611, 1.0
        %819 = vst.msk [vmem:[%s772 + $0x70] sm:$0xff] %vm611, 1.0
        %820 = vst.msk [vmem:[%s772 + $0x78] sm:$0xff] %vm611, 1.0
        %821 = vst.msk [vmem:[%s772 + $0x80] sm:$0xff] %vm611, 1.0
        %822 = vst.msk [vmem:[%s772 + $0x88] sm:$0xff] %vm611, 1.0
        %823 = vst.msk [vmem:[%s772 + $0x90] sm:$0xff] %vm611, 1.0
        %824 = vst.msk [vmem:[%s772 + $0x98] sm:$0xff] %vm611, 1.0
        %825 = vst.msk [vmem:[%s772 + $0xa0] sm:$0xff] %vm611, 1.0
        %826 = vst.msk [vmem:[%s772 + $0xa8] sm:$0xff] %vm611, 1.0
        %827 = vst.msk [vmem:[%s772 + $0xb0] sm:$0xff] %vm611, 1.0
        %828 = vst.msk [vmem:[%s772 + $0xb8] sm:$0xff] %vm611, 1.0
        %829 = vst.msk [vmem:[%s772 + $0xc0] sm:$0xff] %vm611, 1.0
        %830 = vst.msk [vmem:[%s772 + $0xc8] sm:$0xff] %vm611, 1.0
        %831 = vst.msk [vmem:[%s772 + $0xd0] sm:$0xff] %vm611, 1.0
        %832 = vst.msk [vmem:[%s772 + $0xd8] sm:$0xff] %vm611, 1.0
        %833 = vst.msk [vmem:[%s772 + $0xe0] sm:$0xff] %vm611, 1.0
        %834 = vst.msk [vmem:[%s772 + $0xe8] sm:$0xff] %vm611, 1.0
        %835 = vst.msk [vmem:[%s772 + $0xf0] sm:$0xff] %vm611, 1.0
        %836 = vst.msk [vmem:[%s772 + $0xf8] sm:$0xff] %vm611, 1.0
        %837 = vrot.lane.b32.xlu0 %v420, 112
        %v838 = vpop.permute.xlu0 %837
        %839 = vrot.lane.b32.xlu0 %v425, 112
        %v840 = vpop.permute.xlu0 %839
        %841 = vrot.lane.b32.xlu0 %v430, 112
        %v842 = vpop.permute.xlu0 %841
        %843 = vrot.lane.b32.xlu0 %v435, 112
        %v844 = vpop.permute.xlu0 %843
        %845 = vrot.lane.b32.xlu0 %v440, 112
        %v846 = vpop.permute.xlu0 %845
        %847 = vrot.lane.b32.xlu0 %v445, 112
        %v848 = vpop.permute.xlu0 %847
        %849 = vrot.lane.b32.xlu0 %v450, 112
        %v850 = vpop.permute.xlu0 %849
        %851 = vrot.lane.b32.xlu0 %v455, 112
        %v852 = vpop.permute.xlu0 %851
        %853 = vrot.lane.b32.xlu0 %v460, 112
        %v854 = vpop.permute.xlu0 %853
        %855 = vrot.lane.b32.xlu0 %v465, 112
        %v856 = vpop.permute.xlu0 %855
        %857 = vrot.lane.b32.xlu0 %v470, 112
        %v858 = vpop.permute.xlu0 %857
        %859 = vrot.lane.b32.xlu0 %v475, 112
        %v860 = vpop.permute.xlu0 %859
        %861 = vrot.lane.b32.xlu0 %v480, 112
        %v862 = vpop.permute.xlu0 %861
        %863 = vrot.lane.b32.xlu0 %v485, 112
        %v864 = vpop.permute.xlu0 %863
        %865 = vrot.lane.b32.xlu0 %v490, 112
        %v866 = vpop.permute.xlu0 %865
        %867 = vrot.lane.b32.xlu0 %v495, 112
        %v868 = vpop.permute.xlu0 %867
        %869 = vrot.lane.b32.xlu0 %v500, 112
        %v870 = vpop.permute.xlu0 %869
        %871 = vrot.lane.b32.xlu0 %v505, 112
        %v872 = vpop.permute.xlu0 %871
        %873 = vrot.lane.b32.xlu0 %v510, 112
        %v874 = vpop.permute.xlu0 %873
        %875 = vrot.lane.b32.xlu0 %v515, 112
        %v876 = vpop.permute.xlu0 %875
        %877 = vrot.lane.b32.xlu0 %v520, 112
        %v878 = vpop.permute.xlu0 %877
        %879 = vrot.lane.b32.xlu0 %v525, 112
        %v880 = vpop.permute.xlu0 %879
        %881 = vrot.lane.b32.xlu0 %v530, 112
        %v882 = vpop.permute.xlu0 %881
        %883 = vrot.lane.b32.xlu0 %v535, 112
        %v884 = vpop.permute.xlu0 %883
        %885 = vrot.lane.b32.xlu0 %v540, 112
        %v886 = vpop.permute.xlu0 %885
        %887 = vrot.lane.b32.xlu0 %v545, 112
        %v888 = vpop.permute.xlu0 %887
        %889 = vrot.lane.b32.xlu0 %v550, 112
        %v890 = vpop.permute.xlu0 %889
        %891 = vrot.lane.b32.xlu0 %v555, 112
        %v892 = vpop.permute.xlu0 %891
        %893 = vrot.lane.b32.xlu0 %v560, 112
        %v894 = vpop.permute.xlu0 %893
        %895 = vrot.lane.b32.xlu0 %v565, 112
        %v896 = vpop.permute.xlu0 %895
        %897 = vrot.lane.b32.xlu0 %v570, 112
        %v898 = vpop.permute.xlu0 %897
        %899 = vrot.lane.b32.xlu0 %v575, 112
        %v900 = vpop.permute.xlu0 %899
        %vm933 = vcmask 15360
        %934 = vst.msk [vmem:[%s214] sm:$0xff] %vm933, %v838
        %935 = vst.msk [vmem:[%s214 + $0x8] sm:$0xff] %vm933, %v840
        %936 = vst.msk [vmem:[%s214 + $0x10] sm:$0xff] %vm933, %v842
        %937 = vst.msk [vmem:[%s214 + $0x18] sm:$0xff] %vm933, %v844
        %938 = vst.msk [vmem:[%s214 + $0x20] sm:$0xff] %vm933, %v846
        %939 = vst.msk [vmem:[%s214 + $0x28] sm:$0xff] %vm933, %v848
        %940 = vst.msk [vmem:[%s214 + $0x30] sm:$0xff] %vm933, %v850
        %941 = vst.msk [vmem:[%s214 + $0x38] sm:$0xff] %vm933, %v852
        %942 = vst.msk [vmem:[%s214 + $0x40] sm:$0xff] %vm933, %v854
        %943 = vst.msk [vmem:[%s214 + $0x48] sm:$0xff] %vm933, %v856
        %944 = vst.msk [vmem:[%s214 + $0x50] sm:$0xff] %vm933, %v858
        %945 = vst.msk [vmem:[%s214 + $0x58] sm:$0xff] %vm933, %v860
        %946 = vst.msk [vmem:[%s214 + $0x60] sm:$0xff] %vm933, %v862
        %947 = vst.msk [vmem:[%s214 + $0x68] sm:$0xff] %vm933, %v864
        %948 = vst.msk [vmem:[%s214 + $0x70] sm:$0xff] %vm933, %v866
        %949 = vst.msk [vmem:[%s214 + $0x78] sm:$0xff] %vm933, %v868
        %950 = vst.msk [vmem:[%s214 + $0x80] sm:$0xff] %vm933, %v870
        %951 = vst.msk [vmem:[%s214 + $0x88] sm:$0xff] %vm933, %v872
        %952 = vst.msk [vmem:[%s214 + $0x90] sm:$0xff] %vm933, %v874
        %953 = vst.msk [vmem:[%s214 + $0x98] sm:$0xff] %vm933, %v876
        %954 = vst.msk [vmem:[%s214 + $0xa0] sm:$0xff] %vm933, %v878
        %955 = vst.msk [vmem:[%s214 + $0xa8] sm:$0xff] %vm933, %v880
        %956 = vst.msk [vmem:[%s214 + $0xb0] sm:$0xff] %vm933, %v882
        %957 = vst.msk [vmem:[%s214 + $0xb8] sm:$0xff] %vm933, %v884
        %958 = vst.msk [vmem:[%s214 + $0xc0] sm:$0xff] %vm933, %v886
        %959 = vst.msk [vmem:[%s214 + $0xc8] sm:$0xff] %vm933, %v888
        %960 = vst.msk [vmem:[%s214 + $0xd0] sm:$0xff] %vm933, %v890
        %961 = vst.msk [vmem:[%s214 + $0xd8] sm:$0xff] %vm933, %v892
        %962 = vst.msk [vmem:[%s214 + $0xe0] sm:$0xff] %vm933, %v894
        %963 = vst.msk [vmem:[%s214 + $0xe8] sm:$0xff] %vm933, %v896
        %964 = vst.msk [vmem:[%s214 + $0xf0] sm:$0xff] %vm933, %v898
        %965 = vst.msk [vmem:[%s214 + $0xf8] sm:$0xff] %vm933, %v900
        %966 = vrot.lane.b32.xlu0 %v420, 110
        %v967 = vpop.permute.xlu0 %966
        %968 = vrot.lane.b32.xlu0 %v425, 110
        %v969 = vpop.permute.xlu0 %968
        %970 = vrot.lane.b32.xlu0 %v430, 110
        %v971 = vpop.permute.xlu0 %970
        %972 = vrot.lane.b32.xlu0 %v435, 110
        %v973 = vpop.permute.xlu0 %972
        %974 = vrot.lane.b32.xlu0 %v440, 110
        %v975 = vpop.permute.xlu0 %974
        %976 = vrot.lane.b32.xlu0 %v445, 110
        %v977 = vpop.permute.xlu0 %976
        %978 = vrot.lane.b32.xlu0 %v450, 110
        %v979 = vpop.permute.xlu0 %978
        %980 = vrot.lane.b32.xlu0 %v455, 110
        %v981 = vpop.permute.xlu0 %980
        %982 = vrot.lane.b32.xlu0 %v460, 110
        %v983 = vpop.permute.xlu0 %982
        %984 = vrot.lane.b32.xlu0 %v465, 110
        %v985 = vpop.permute.xlu0 %984
        %986 = vrot.lane.b32.xlu0 %v470, 110
        %v987 = vpop.permute.xlu0 %986
        %988 = vrot.lane.b32.xlu0 %v475, 110
        %v989 = vpop.permute.xlu0 %988
        %990 = vrot.lane.b32.xlu0 %v480, 110
        %v991 = vpop.permute.xlu0 %990
        %992 = vrot.lane.b32.xlu0 %v485, 110
        %v993 = vpop.permute.xlu0 %992
        %994 = vrot.lane.b32.xlu0 %v490, 110
        %v995 = vpop.permute.xlu0 %994
        %996 = vrot.lane.b32.xlu0 %v495, 110
        %v997 = vpop.permute.xlu0 %996
        %998 = vrot.lane.b32.xlu0 %v500, 110
        %v999 = vpop.permute.xlu0 %998
        %1000 = vrot.lane.b32.xlu0 %v505, 110
        %v1001 = vpop.permute.xlu0 %1000
        %1002 = vrot.lane.b32.xlu0 %v510, 110
        %v1003 = vpop.permute.xlu0 %1002
        %1004 = vrot.lane.b32.xlu0 %v515, 110
        %v1005 = vpop.permute.xlu0 %1004
        %1006 = vrot.lane.b32.xlu0 %v520, 110
        %v1007 = vpop.permute.xlu0 %1006
        %1008 = vrot.lane.b32.xlu0 %v525, 110
        %v1009 = vpop.permute.xlu0 %1008
        %1010 = vrot.lane.b32.xlu0 %v530, 110
        %v1011 = vpop.permute.xlu0 %1010
        %1012 = vrot.lane.b32.xlu0 %v535, 110
        %v1013 = vpop.permute.xlu0 %1012
        %1014 = vrot.lane.b32.xlu0 %v540, 110
        %v1015 = vpop.permute.xlu0 %1014
        %1016 = vrot.lane.b32.xlu0 %v545, 110
        %v1017 = vpop.permute.xlu0 %1016
        %1018 = vrot.lane.b32.xlu0 %v550, 110
        %v1019 = vpop.permute.xlu0 %1018
        %1020 = vrot.lane.b32.xlu0 %v555, 110
        %v1021 = vpop.permute.xlu0 %1020
        %1022 = vrot.lane.b32.xlu0 %v560, 110
        %v1023 = vpop.permute.xlu0 %1022
        %1024 = vrot.lane.b32.xlu0 %v565, 110
        %v1025 = vpop.permute.xlu0 %1024
        %1026 = vrot.lane.b32.xlu0 %v570, 110
        %v1027 = vpop.permute.xlu0 %1026
        %1028 = vrot.lane.b32.xlu0 %v575, 110
        %v1029 = vpop.permute.xlu0 %1028
        %1062 = vst.msk [vmem:[%s220] sm:$0xff] %vm933, %v967
        %1063 = vst.msk [vmem:[%s220 + $0x8] sm:$0xff] %vm933, %v969
        %1064 = vst.msk [vmem:[%s220 + $0x10] sm:$0xff] %vm933, %v971
        %1065 = vst.msk [vmem:[%s220 + $0x18] sm:$0xff] %vm933, %v973
        %1066 = vst.msk [vmem:[%s220 + $0x20] sm:$0xff] %vm933, %v975
        %1067 = vst.msk [vmem:[%s220 + $0x28] sm:$0xff] %vm933, %v977
        %1068 = vst.msk [vmem:[%s220 + $0x30] sm:$0xff] %vm933, %v979
        %1069 = vst.msk [vmem:[%s220 + $0x38] sm:$0xff] %vm933, %v981
        %1070 = vst.msk [vmem:[%s220 + $0x40] sm:$0xff] %vm933, %v983
        %1071 = vst.msk [vmem:[%s220 + $0x48] sm:$0xff] %vm933, %v985
        %1072 = vst.msk [vmem:[%s220 + $0x50] sm:$0xff] %vm933, %v987
        %1073 = vst.msk [vmem:[%s220 + $0x58] sm:$0xff] %vm933, %v989
        %1074 = vst.msk [vmem:[%s220 + $0x60] sm:$0xff] %vm933, %v991
        %1075 = vst.msk [vmem:[%s220 + $0x68] sm:$0xff] %vm933, %v993
        %1076 = vst.msk [vmem:[%s220 + $0x70] sm:$0xff] %vm933, %v995
        %1077 = vst.msk [vmem:[%s220 + $0x78] sm:$0xff] %vm933, %v997
        %1078 = vst.msk [vmem:[%s220 + $0x80] sm:$0xff] %vm933, %v999
        %1079 = vst.msk [vmem:[%s220 + $0x88] sm:$0xff] %vm933, %v1001
        %1080 = vst.msk [vmem:[%s220 + $0x90] sm:$0xff] %vm933, %v1003
        %1081 = vst.msk [vmem:[%s220 + $0x98] sm:$0xff] %vm933, %v1005
        %1082 = vst.msk [vmem:[%s220 + $0xa0] sm:$0xff] %vm933, %v1007
        %1083 = vst.msk [vmem:[%s220 + $0xa8] sm:$0xff] %vm933, %v1009
        %1084 = vst.msk [vmem:[%s220 + $0xb0] sm:$0xff] %vm933, %v1011
        %1085 = vst.msk [vmem:[%s220 + $0xb8] sm:$0xff] %vm933, %v1013
        %1086 = vst.msk [vmem:[%s220 + $0xc0] sm:$0xff] %vm933, %v1015
        %1087 = vst.msk [vmem:[%s220 + $0xc8] sm:$0xff] %vm933, %v1017
        %1088 = vst.msk [vmem:[%s220 + $0xd0] sm:$0xff] %vm933, %v1019
        %1089 = vst.msk [vmem:[%s220 + $0xd8] sm:$0xff] %vm933, %v1021
        %1090 = vst.msk [vmem:[%s220 + $0xe0] sm:$0xff] %vm933, %v1023
        %1091 = vst.msk [vmem:[%s220 + $0xe8] sm:$0xff] %vm933, %v1025
        %1092 = vst.msk [vmem:[%s220 + $0xf0] sm:$0xff] %vm933, %v1027
        %1093 = vst.msk [vmem:[%s220 + $0xf8] sm:$0xff] %vm933, %v1029
        %s1094 = sand.u32 %s71, 1
        %s1095 = sand.u32 %s71, 1
        %s1096 = smul.addr %s1095, 512
        %s1097 = scalar_lea.vmem [#allocation2], %s1096
        %s1098 = smul.u32 32, %s16
        %p1099 = scmp.lt.s32.totalorder %s1098, 63
        %s1100 = scalar_select %p1099, %s1098, 63
        %s1101 = smul.addr %s1100, 8
        %s1102 = scalar_lea.vmem %s3, %s1101
        %s1103 = smul.u32 32, %s16
        %p1104 = scmp.lt.s32.totalorder %s1103, 63
        %s1105 = scalar_select %p1104, %s1103, 63
        %s1106 = smul.addr %s1105, 8
        %s1107 = scalar_lea.vmem %s4, %s1106
        // Predicated region
        $region29: #{tpu_custom_call.1} parent=27 // pred_check
          %p1108 = pneg %p81
        $region30: #{tpu_custom_call.1} parent=27 // pred_check_branch
          %1110 = sbr.rel (%p1108) target = $region32
        $region31: #{tpu_custom_call.1} parent=27 // pred_region
          %s1111 = smul.u32 32, %s16
          %s1112 = smul.addr %s1111, 8
          %s1113 = scalar_lea.vmem %s2, %s1112
          // Predicated region
          $region33: #{tpu_custom_call.1} parent=31 // pred_check
            _
          $region34: #{tpu_custom_call.1} parent=31 // pred_check_branch
            %1115 = sbr.rel (0) target = $region36
          $region35: #{tpu_custom_call.1} parent=31 // pred_region
            // Predicated region
            $region37: #{tpu_custom_call.1} parent=35 // pred_check
              _
            $region38: #{tpu_custom_call.1} parent=35 // pred_check_branch
              %1117 = sbr.rel (0) target = $region40
            $region39: #{tpu_custom_call.1} parent=35 // pred_region
              // Predicated region
              $region52: #{tpu_custom_call.1} parent=39 // pred_check
                _
              $region53: #{tpu_custom_call.1} parent=39 // pred_check_branch
                %1258 = sbr.rel (0) target = $region55
              $region54: #{tpu_custom_call.1} parent=39 // pred_region
                loop: start=0, step=1, limit=1
                $region56: #{tpu_custom_call.1} parent=54 // loop_pre_header
                  _
                $region57: #{tpu_custom_call.1} parent=54 // loop_header
                  %s1260 = sphi 0, %s1264
                  %p1261 = scmp.ge.s32.totalorder %s1260, 1
                  %s1265 = sphi %s1097, %s1097
                  %s1266 = sphi %s1113, %s1113
                $region58: #{tpu_custom_call.1} parent=54 // loop_header_branch
                  %1263 = sbr.rel (%p1261) target = $region62
                $region59: #{tpu_custom_call.1} parent=54 // loop_body
                  %v1267 = vld [vmem:[%s1265] sm:$0xff]
                  %1268 = vst [vmem:[%s1266] sm:$0xff] %v1267
                  %v1269 = vld [vmem:[%s1265 + $0x8] sm:$0xff]
                  %1270 = vst [vmem:[%s1266 + $0x8] sm:$0xff] %v1269
                  %v1271 = vld [vmem:[%s1265 + $0x10] sm:$0xff]
                  %1272 = vst [vmem:[%s1266 + $0x10] sm:$0xff] %v1271
                  %v1273 = vld [vmem:[%s1265 + $0x18] sm:$0xff]
                  %1274 = vst [vmem:[%s1266 + $0x18] sm:$0xff] %v1273
                  %v1275 = vld [vmem:[%s1265 + $0x20] sm:$0xff]
                  %1276 = vst [vmem:[%s1266 + $0x20] sm:$0xff] %v1275
                  %v1277 = vld [vmem:[%s1265 + $0x28] sm:$0xff]
                  %1278 = vst [vmem:[%s1266 + $0x28] sm:$0xff] %v1277
                  %v1279 = vld [vmem:[%s1265 + $0x30] sm:$0xff]
                  %1280 = vst [vmem:[%s1266 + $0x30] sm:$0xff] %v1279
                  %v1281 = vld [vmem:[%s1265 + $0x38] sm:$0xff]
                  %1282 = vst [vmem:[%s1266 + $0x38] sm:$0xff] %v1281
                  %v1283 = vld [vmem:[%s1265 + $0x40] sm:$0xff]
                  %1284 = vst [vmem:[%s1266 + $0x40] sm:$0xff] %v1283
                  %v1285 = vld [vmem:[%s1265 + $0x48] sm:$0xff]
                  %1286 = vst [vmem:[%s1266 + $0x48] sm:$0xff] %v1285
                  %v1287 = vld [vmem:[%s1265 + $0x50] sm:$0xff]
                  %1288 = vst [vmem:[%s1266 + $0x50] sm:$0xff] %v1287
                  %v1289 = vld [vmem:[%s1265 + $0x58] sm:$0xff]
                  %1290 = vst [vmem:[%s1266 + $0x58] sm:$0xff] %v1289
                  %v1291 = vld [vmem:[%s1265 + $0x60] sm:$0xff]
                  %1292 = vst [vmem:[%s1266 + $0x60] sm:$0xff] %v1291
                  %v1293 = vld [vmem:[%s1265 + $0x68] sm:$0xff]
                  %1294 = vst [vmem:[%s1266 + $0x68] sm:$0xff] %v1293
                  %v1295 = vld [vmem:[%s1265 + $0x70] sm:$0xff]
                  %1296 = vst [vmem:[%s1266 + $0x70] sm:$0xff] %v1295
                  %v1297 = vld [vmem:[%s1265 + $0x78] sm:$0xff]
                  %1298 = vst [vmem:[%s1266 + $0x78] sm:$0xff] %v1297
                  %v1299 = vld [vmem:[%s1265 + $0x80] sm:$0xff]
                  %1300 = vst [vmem:[%s1266 + $0x80] sm:$0xff] %v1299
                  %v1301 = vld [vmem:[%s1265 + $0x88] sm:$0xff]
                  %1302 = vst [vmem:[%s1266 + $0x88] sm:$0xff] %v1301
                  %v1303 = vld [vmem:[%s1265 + $0x90] sm:$0xff]
                  %1304 = vst [vmem:[%s1266 + $0x90] sm:$0xff] %v1303
                  %v1305 = vld [vmem:[%s1265 + $0x98] sm:$0xff]
                  %1306 = vst [vmem:[%s1266 + $0x98] sm:$0xff] %v1305
                  %v1307 = vld [vmem:[%s1265 + $0xa0] sm:$0xff]
                  %1308 = vst [vmem:[%s1266 + $0xa0] sm:$0xff] %v1307
                  %v1309 = vld [vmem:[%s1265 + $0xa8] sm:$0xff]
                  %1310 = vst [vmem:[%s1266 + $0xa8] sm:$0xff] %v1309
                  %v1311 = vld [vmem:[%s1265 + $0xb0] sm:$0xff]
                  %1312 = vst [vmem:[%s1266 + $0xb0] sm:$0xff] %v1311
                  %v1313 = vld [vmem:[%s1265 + $0xb8] sm:$0xff]
                  %1314 = vst [vmem:[%s1266 + $0xb8] sm:$0xff] %v1313
                  %v1315 = vld [vmem:[%s1265 + $0xc0] sm:$0xff]
                  %1316 = vst [vmem:[%s1266 + $0xc0] sm:$0xff] %v1315
                  %v1317 = vld [vmem:[%s1265 + $0xc8] sm:$0xff]
                  %1318 = vst [vmem:[%s1266 + $0xc8] sm:$0xff] %v1317
                  %v1319 = vld [vmem:[%s1265 + $0xd0] sm:$0xff]
                  %1320 = vst [vmem:[%s1266 + $0xd0] sm:$0xff] %v1319
                  %v1321 = vld [vmem:[%s1265 + $0xd8] sm:$0xff]
                  %1322 = vst [vmem:[%s1266 + $0xd8] sm:$0xff] %v1321
                  %v1323 = vld [vmem:[%s1265 + $0xe0] sm:$0xff]
                  %1324 = vst [vmem:[%s1266 + $0xe0] sm:$0xff] %v1323
                  %v1325 = vld [vmem:[%s1265 + $0xe8] sm:$0xff]
                  %1326 = vst [vmem:[%s1266 + $0xe8] sm:$0xff] %v1325
                  %v1327 = vld [vmem:[%s1265 + $0xf0] sm:$0xff]
                  %1328 = vst [vmem:[%s1266 + $0xf0] sm:$0xff] %v1327
                  %v1329 = vld [vmem:[%s1265 + $0xf8] sm:$0xff]
                  %1330 = vst [vmem:[%s1266 + $0xf8] sm:$0xff] %v1329
                  %v1331 = vld [vmem:[%s1265 + $0x100] sm:$0xff]
                  %1332 = vst [vmem:[%s1266 + $0x200] sm:$0xff] %v1331
                  %v1333 = vld [vmem:[%s1265 + $0x108] sm:$0xff]
                  %1334 = vst [vmem:[%s1266 + $0x208] sm:$0xff] %v1333
                  %v1335 = vld [vmem:[%s1265 + $0x110] sm:$0xff]
                  %1336 = vst [vmem:[%s1266 + $0x210] sm:$0xff] %v1335
                  %v1337 = vld [vmem:[%s1265 + $0x118] sm:$0xff]
                  %1338 = vst [vmem:[%s1266 + $0x218] sm:$0xff] %v1337
                  %v1339 = vld [vmem:[%s1265 + $0x120] sm:$0xff]
                  %1340 = vst [vmem:[%s1266 + $0x220] sm:$0xff] %v1339
                  %v1341 = vld [vmem:[%s1265 + $0x128] sm:$0xff]
                  %1342 = vst [vmem:[%s1266 + $0x228] sm:$0xff] %v1341
                  %v1343 = vld [vmem:[%s1265 + $0x130] sm:$0xff]
                  %1344 = vst [vmem:[%s1266 + $0x230] sm:$0xff] %v1343
                  %v1345 = vld [vmem:[%s1265 + $0x138] sm:$0xff]
                  %1346 = vst [vmem:[%s1266 + $0x238] sm:$0xff] %v1345
                  %v1347 = vld [vmem:[%s1265 + $0x140] sm:$0xff]
                  %1348 = vst [vmem:[%s1266 + $0x240] sm:$0xff] %v1347
                  %v1349 = vld [vmem:[%s1265 + $0x148] sm:$0xff]
                  %1350 = vst [vmem:[%s1266 + $0x248] sm:$0xff] %v1349
                  %v1351 = vld [vmem:[%s1265 + $0x150] sm:$0xff]
                  %1352 = vst [vmem:[%s1266 + $0x250] sm:$0xff] %v1351
                  %v1353 = vld [vmem:[%s1265 + $0x158] sm:$0xff]
                  %1354 = vst [vmem:[%s1266 + $0x258] sm:$0xff] %v1353
                  %v1355 = vld [vmem:[%s1265 + $0x160] sm:$0xff]
                  %1356 = vst [vmem:[%s1266 + $0x260] sm:$0xff] %v1355
                  %v1357 = vld [vmem:[%s1265 + $0x168] sm:$0xff]
                  %1358 = vst [vmem:[%s1266 + $0x268] sm:$0xff] %v1357
                  %v1359 = vld [vmem:[%s1265 + $0x170] sm:$0xff]
                  %1360 = vst [vmem:[%s1266 + $0x270] sm:$0xff] %v1359
                  %v1361 = vld [vmem:[%s1265 + $0x178] sm:$0xff]
                  %1362 = vst [vmem:[%s1266 + $0x278] sm:$0xff] %v1361
                  %v1363 = vld [vmem:[%s1265 + $0x180] sm:$0xff]
                  %1364 = vst [vmem:[%s1266 + $0x280] sm:$0xff] %v1363
                  %v1365 = vld [vmem:[%s1265 + $0x188] sm:$0xff]
                  %1366 = vst [vmem:[%s1266 + $0x288] sm:$0xff] %v1365
                  %v1367 = vld [vmem:[%s1265 + $0x190] sm:$0xff]
                  %1368 = vst [vmem:[%s1266 + $0x290] sm:$0xff] %v1367
                  %v1369 = vld [vmem:[%s1265 + $0x198] sm:$0xff]
                  %1370 = vst [vmem:[%s1266 + $0x298] sm:$0xff] %v1369
                  %v1371 = vld [vmem:[%s1265 + $0x1a0] sm:$0xff]
                  %1372 = vst [vmem:[%s1266 + $0x2a0] sm:$0xff] %v1371
                  %v1373 = vld [vmem:[%s1265 + $0x1a8] sm:$0xff]
                  %1374 = vst [vmem:[%s1266 + $0x2a8] sm:$0xff] %v1373
                  %v1375 = vld [vmem:[%s1265 + $0x1b0] sm:$0xff]
                  %1376 = vst [vmem:[%s1266 + $0x2b0] sm:$0xff] %v1375
                  %v1377 = vld [vmem:[%s1265 + $0x1b8] sm:$0xff]
                  %1378 = vst [vmem:[%s1266 + $0x2b8] sm:$0xff] %v1377
                  %v1379 = vld [vmem:[%s1265 + $0x1c0] sm:$0xff]
                  %1380 = vst [vmem:[%s1266 + $0x2c0] sm:$0xff] %v1379
                  %v1381 = vld [vmem:[%s1265 + $0x1c8] sm:$0xff]
                  %1382 = vst [vmem:[%s1266 + $0x2c8] sm:$0xff] %v1381
                  %v1383 = vld [vmem:[%s1265 + $0x1d0] sm:$0xff]
                  %1384 = vst [vmem:[%s1266 + $0x2d0] sm:$0xff] %v1383
                  %v1385 = vld [vmem:[%s1265 + $0x1d8] sm:$0xff]
                  %1386 = vst [vmem:[%s1266 + $0x2d8] sm:$0xff] %v1385
                  %v1387 = vld [vmem:[%s1265 + $0x1e0] sm:$0xff]
                  %1388 = vst [vmem:[%s1266 + $0x2e0] sm:$0xff] %v1387
                  %v1389 = vld [vmem:[%s1265 + $0x1e8] sm:$0xff]
                  %1390 = vst [vmem:[%s1266 + $0x2e8] sm:$0xff] %v1389
                  %v1391 = vld [vmem:[%s1265 + $0x1f0] sm:$0xff]
                  %1392 = vst [vmem:[%s1266 + $0x2f0] sm:$0xff] %v1391
                  %v1393 = vld [vmem:[%s1265 + $0x1f8] sm:$0xff]
                  %1394 = vst [vmem:[%s1266 + $0x2f8] sm:$0xff] %v1393
                $region60: #{tpu_custom_call.1} parent=54 // loop_footer
                  %s1264 = sadd.s32 1, %s1260
                $region61: #{tpu_custom_call.1} parent=54 // loop_footer_branch
                  %1259 = sbr.rel target = $region57
                $region62: #{tpu_custom_call.1} parent=54 // loop_exit
                  _
              $region55: #{tpu_custom_call.1} parent=39 // pred_fallthru
                _
              // Predicated region
              $region63: #{tpu_custom_call.1} parent=39 // pred_check
                _
              $region64: #{tpu_custom_call.1} parent=39 // pred_check_branch
                %1396 = sbr.rel target = $region66
              $region65: #{tpu_custom_call.1} parent=39 // pred_region
                _
              $region66: #{tpu_custom_call.1} parent=39 // pred_fallthru
                _
            $region40: #{tpu_custom_call.1} parent=35 // pred_fallthru
              _
            // Predicated region
            $region41: #{tpu_custom_call.1} parent=35 // pred_check
              _
            $region42: #{tpu_custom_call.1} parent=35 // pred_check_branch
              %1119 = sbr.rel target = $region44
            $region43: #{tpu_custom_call.1} parent=35 // pred_region
              loop: start=0, step=1, limit=1
              $region45: #{tpu_custom_call.1} parent=43 // loop_pre_header
                _
              $region46: #{tpu_custom_call.1} parent=43 // loop_header
                %s1122 = sphi 0, %s1126
                %p1123 = scmp.ge.s32.totalorder %s1122, 1
                %s1127 = sphi %s1097, %s1097
                %s1128 = sphi %s1113, %s1113
              $region47: #{tpu_custom_call.1} parent=43 // loop_header_branch
                %1125 = sbr.rel (%p1123) target = $region51
              $region48: #{tpu_custom_call.1} parent=43 // loop_body
                %v1129 = vld [vmem:[%s1127] sm:$0xff]
                %1130 = vst [vmem:[%s1128] sm:$0xff] %v1129
                %v1131 = vld [vmem:[%s1127 + $0x8] sm:$0xff]
                %1132 = vst [vmem:[%s1128 + $0x8] sm:$0xff] %v1131
                %v1133 = vld [vmem:[%s1127 + $0x10] sm:$0xff]
                %1134 = vst [vmem:[%s1128 + $0x10] sm:$0xff] %v1133
                %v1135 = vld [vmem:[%s1127 + $0x18] sm:$0xff]
                %1136 = vst [vmem:[%s1128 + $0x18] sm:$0xff] %v1135
                %v1137 = vld [vmem:[%s1127 + $0x20] sm:$0xff]
                %1138 = vst [vmem:[%s1128 + $0x20] sm:$0xff] %v1137
                %v1139 = vld [vmem:[%s1127 + $0x28] sm:$0xff]
                %1140 = vst [vmem:[%s1128 + $0x28] sm:$0xff] %v1139
                %v1141 = vld [vmem:[%s1127 + $0x30] sm:$0xff]
                %1142 = vst [vmem:[%s1128 + $0x30] sm:$0xff] %v1141
                %v1143 = vld [vmem:[%s1127 + $0x38] sm:$0xff]
                %1144 = vst [vmem:[%s1128 + $0x38] sm:$0xff] %v1143
                %v1145 = vld [vmem:[%s1127 + $0x40] sm:$0xff]
                %1146 = vst [vmem:[%s1128 + $0x40] sm:$0xff] %v1145
                %v1147 = vld [vmem:[%s1127 + $0x48] sm:$0xff]
                %1148 = vst [vmem:[%s1128 + $0x48] sm:$0xff] %v1147
                %v1149 = vld [vmem:[%s1127 + $0x50] sm:$0xff]
                %1150 = vst [vmem:[%s1128 + $0x50] sm:$0xff] %v1149
                %v1151 = vld [vmem:[%s1127 + $0x58] sm:$0xff]
                %1152 = vst [vmem:[%s1128 + $0x58] sm:$0xff] %v1151
                %v1153 = vld [vmem:[%s1127 + $0x60] sm:$0xff]
                %1154 = vst [vmem:[%s1128 + $0x60] sm:$0xff] %v1153
                %v1155 = vld [vmem:[%s1127 + $0x68] sm:$0xff]
                %1156 = vst [vmem:[%s1128 + $0x68] sm:$0xff] %v1155
                %v1157 = vld [vmem:[%s1127 + $0x70] sm:$0xff]
                %1158 = vst [vmem:[%s1128 + $0x70] sm:$0xff] %v1157
                %v1159 = vld [vmem:[%s1127 + $0x78] sm:$0xff]
                %1160 = vst [vmem:[%s1128 + $0x78] sm:$0xff] %v1159
                %v1161 = vld [vmem:[%s1127 + $0x80] sm:$0xff]
                %1162 = vst [vmem:[%s1128 + $0x80] sm:$0xff] %v1161
                %v1163 = vld [vmem:[%s1127 + $0x88] sm:$0xff]
                %1164 = vst [vmem:[%s1128 + $0x88] sm:$0xff] %v1163
                %v1165 = vld [vmem:[%s1127 + $0x90] sm:$0xff]
                %1166 = vst [vmem:[%s1128 + $0x90] sm:$0xff] %v1165
                %v1167 = vld [vmem:[%s1127 + $0x98] sm:$0xff]
                %1168 = vst [vmem:[%s1128 + $0x98] sm:$0xff] %v1167
                %v1169 = vld [vmem:[%s1127 + $0xa0] sm:$0xff]
                %1170 = vst [vmem:[%s1128 + $0xa0] sm:$0xff] %v1169
                %v1171 = vld [vmem:[%s1127 + $0xa8] sm:$0xff]
                %1172 = vst [vmem:[%s1128 + $0xa8] sm:$0xff] %v1171
                %v1173 = vld [vmem:[%s1127 + $0xb0] sm:$0xff]
                %1174 = vst [vmem:[%s1128 + $0xb0] sm:$0xff] %v1173
                %v1175 = vld [vmem:[%s1127 + $0xb8] sm:$0xff]
                %1176 = vst [vmem:[%s1128 + $0xb8] sm:$0xff] %v1175
                %v1177 = vld [vmem:[%s1127 + $0xc0] sm:$0xff]
                %1178 = vst [vmem:[%s1128 + $0xc0] sm:$0xff] %v1177
                %v1179 = vld [vmem:[%s1127 + $0xc8] sm:$0xff]
                %1180 = vst [vmem:[%s1128 + $0xc8] sm:$0xff] %v1179
                %v1181 = vld [vmem:[%s1127 + $0xd0] sm:$0xff]
                %1182 = vst [vmem:[%s1128 + $0xd0] sm:$0xff] %v1181
                %v1183 = vld [vmem:[%s1127 + $0xd8] sm:$0xff]
                %1184 = vst [vmem:[%s1128 + $0xd8] sm:$0xff] %v1183
                %v1185 = vld [vmem:[%s1127 + $0xe0] sm:$0xff]
                %1186 = vst [vmem:[%s1128 + $0xe0] sm:$0xff] %v1185
                %v1187 = vld [vmem:[%s1127 + $0xe8] sm:$0xff]
                %1188 = vst [vmem:[%s1128 + $0xe8] sm:$0xff] %v1187
                %v1189 = vld [vmem:[%s1127 + $0xf0] sm:$0xff]
                %1190 = vst [vmem:[%s1128 + $0xf0] sm:$0xff] %v1189
                %v1191 = vld [vmem:[%s1127 + $0xf8] sm:$0xff]
                %1192 = vst [vmem:[%s1128 + $0xf8] sm:$0xff] %v1191
                %v1193 = vld [vmem:[%s1127 + $0x100] sm:$0xff]
                %1194 = vst [vmem:[%s1128 + $0x200] sm:$0xff] %v1193
                %v1195 = vld [vmem:[%s1127 + $0x108] sm:$0xff]
                %1196 = vst [vmem:[%s1128 + $0x208] sm:$0xff] %v1195
                %v1197 = vld [vmem:[%s1127 + $0x110] sm:$0xff]
                %1198 = vst [vmem:[%s1128 + $0x210] sm:$0xff] %v1197
                %v1199 = vld [vmem:[%s1127 + $0x118] sm:$0xff]
                %1200 = vst [vmem:[%s1128 + $0x218] sm:$0xff] %v1199
                %v1201 = vld [vmem:[%s1127 + $0x120] sm:$0xff]
                %1202 = vst [vmem:[%s1128 + $0x220] sm:$0xff] %v1201
                %v1203 = vld [vmem:[%s1127 + $0x128] sm:$0xff]
                %1204 = vst [vmem:[%s1128 + $0x228] sm:$0xff] %v1203
                %v1205 = vld [vmem:[%s1127 + $0x130] sm:$0xff]
                %1206 = vst [vmem:[%s1128 + $0x230] sm:$0xff] %v1205
                %v1207 = vld [vmem:[%s1127 + $0x138] sm:$0xff]
                %1208 = vst [vmem:[%s1128 + $0x238] sm:$0xff] %v1207
                %v1209 = vld [vmem:[%s1127 + $0x140] sm:$0xff]
                %1210 = vst [vmem:[%s1128 + $0x240] sm:$0xff] %v1209
                %v1211 = vld [vmem:[%s1127 + $0x148] sm:$0xff]
                %1212 = vst [vmem:[%s1128 + $0x248] sm:$0xff] %v1211
                %v1213 = vld [vmem:[%s1127 + $0x150] sm:$0xff]
                %1214 = vst [vmem:[%s1128 + $0x250] sm:$0xff] %v1213
                %v1215 = vld [vmem:[%s1127 + $0x158] sm:$0xff]
                %1216 = vst [vmem:[%s1128 + $0x258] sm:$0xff] %v1215
                %v1217 = vld [vmem:[%s1127 + $0x160] sm:$0xff]
                %1218 = vst [vmem:[%s1128 + $0x260] sm:$0xff] %v1217
                %v1219 = vld [vmem:[%s1127 + $0x168] sm:$0xff]
                %1220 = vst [vmem:[%s1128 + $0x268] sm:$0xff] %v1219
                %v1221 = vld [vmem:[%s1127 + $0x170] sm:$0xff]
                %1222 = vst [vmem:[%s1128 + $0x270] sm:$0xff] %v1221
                %v1223 = vld [vmem:[%s1127 + $0x178] sm:$0xff]
                %1224 = vst [vmem:[%s1128 + $0x278] sm:$0xff] %v1223
                %v1225 = vld [vmem:[%s1127 + $0x180] sm:$0xff]
                %1226 = vst [vmem:[%s1128 + $0x280] sm:$0xff] %v1225
                %v1227 = vld [vmem:[%s1127 + $0x188] sm:$0xff]
                %1228 = vst [vmem:[%s1128 + $0x288] sm:$0xff] %v1227
                %v1229 = vld [vmem:[%s1127 + $0x190] sm:$0xff]
                %1230 = vst [vmem:[%s1128 + $0x290] sm:$0xff] %v1229
                %v1231 = vld [vmem:[%s1127 + $0x198] sm:$0xff]
                %1232 = vst [vmem:[%s1128 + $0x298] sm:$0xff] %v1231
                %v1233 = vld [vmem:[%s1127 + $0x1a0] sm:$0xff]
                %1234 = vst [vmem:[%s1128 + $0x2a0] sm:$0xff] %v1233
                %v1235 = vld [vmem:[%s1127 + $0x1a8] sm:$0xff]
                %1236 = vst [vmem:[%s1128 + $0x2a8] sm:$0xff] %v1235
                %v1237 = vld [vmem:[%s1127 + $0x1b0] sm:$0xff]
                %1238 = vst [vmem:[%s1128 + $0x2b0] sm:$0xff] %v1237
                %v1239 = vld [vmem:[%s1127 + $0x1b8] sm:$0xff]
                %1240 = vst [vmem:[%s1128 + $0x2b8] sm:$0xff] %v1239
                %v1241 = vld [vmem:[%s1127 + $0x1c0] sm:$0xff]
                %1242 = vst [vmem:[%s1128 + $0x2c0] sm:$0xff] %v1241
                %v1243 = vld [vmem:[%s1127 + $0x1c8] sm:$0xff]
                %1244 = vst [vmem:[%s1128 + $0x2c8] sm:$0xff] %v1243
                %v1245 = vld [vmem:[%s1127 + $0x1d0] sm:$0xff]
                %1246 = vst [vmem:[%s1128 + $0x2d0] sm:$0xff] %v1245
                %v1247 = vld [vmem:[%s1127 + $0x1d8] sm:$0xff]
                %1248 = vst [vmem:[%s1128 + $0x2d8] sm:$0xff] %v1247
                %v1249 = vld [vmem:[%s1127 + $0x1e0] sm:$0xff]
                %1250 = vst [vmem:[%s1128 + $0x2e0] sm:$0xff] %v1249
                %v1251 = vld [vmem:[%s1127 + $0x1e8] sm:$0xff]
                %1252 = vst [vmem:[%s1128 + $0x2e8] sm:$0xff] %v1251
                %v1253 = vld [vmem:[%s1127 + $0x1f0] sm:$0xff]
                %1254 = vst [vmem:[%s1128 + $0x2f0] sm:$0xff] %v1253
                %v1255 = vld [vmem:[%s1127 + $0x1f8] sm:$0xff]
                %1256 = vst [vmem:[%s1128 + $0x2f8] sm:$0xff] %v1255
              $region49: #{tpu_custom_call.1} parent=43 // loop_footer
                %s1126 = sadd.s32 1, %s1122
              $region50: #{tpu_custom_call.1} parent=43 // loop_footer_branch
                %1121 = sbr.rel target = $region46
              $region51: #{tpu_custom_call.1} parent=43 // loop_exit
                _
            $region44: #{tpu_custom_call.1} parent=35 // pred_fallthru
              _
          $region36: #{tpu_custom_call.1} parent=31 // pred_fallthru
            _
          %1397 = vnop
        $region32: #{tpu_custom_call.1} parent=27 // pred_fallthru
          _
        // Predicated region
        $region67: #{tpu_custom_call.1} parent=27 // pred_check
          %p1398 = pneg %p107
        $region68: #{tpu_custom_call.1} parent=27 // pred_check_branch
          %1400 = sbr.rel (%p1398) target = $region70
        $region69: #{tpu_custom_call.1} parent=27 // pred_region
          %s1401 = smul.u32 32, %s16
        $region70: #{tpu_custom_call.1} parent=27 // pred_fallthru
          _
        // Predicated region
        $region71: #{tpu_custom_call.1} parent=27 // pred_check
          %p1402 = pneg %p133
        $region72: #{tpu_custom_call.1} parent=27 // pred_check_branch
          %1404 = sbr.rel (%p1402) target = $region74
        $region73: #{tpu_custom_call.1} parent=27 // pred_region
          %s1405 = smul.u32 32, %s16
        $region74: #{tpu_custom_call.1} parent=27 // pred_fallthru
          _
      $region28: #{tpu_custom_call.1} parent=5 // pred_fallthru
        _
      %p1406 = scmp.le.s32.totalorder 2, %s11
      // Predicated region
      $region75: #{tpu_custom_call.1} parent=5 // pred_check
        %p1407 = pneg %p1406
      $region76: #{tpu_custom_call.1} parent=5 // pred_check_branch
        %1409 = sbr.rel (%p1407) target = $region78
      $region77: #{tpu_custom_call.1} parent=5 // pred_region
        %s1410 = ssub.s32 %s11, 2
        // Predicated region
        $region79: #{tpu_custom_call.1} parent=77 // pred_check
          %p1411 = pneg %p87
        $region80: #{tpu_custom_call.1} parent=77 // pred_check_branch
          %1413 = sbr.rel (%p1411) target = $region82
        $region81: #{tpu_custom_call.1} parent=77 // pred_region
          %s1414 = sand.u32 %s72, 1
          %s1415 = sand.u32 %s72, 1
          %s1416 = smul.addr %s1415, 512
          %s1417 = scalar_lea.vmem [#allocation2], %s1416
        $region82: #{tpu_custom_call.1} parent=77 // pred_fallthru
          _
        // Predicated region
        $region83: #{tpu_custom_call.1} parent=77 // pred_check
          %p1418 = pneg %p113
        $region84: #{tpu_custom_call.1} parent=77 // pred_check_branch
          %1420 = sbr.rel (%p1418) target = $region86
        $region85: #{tpu_custom_call.1} parent=77 // pred_region
          %s1421 = smul.u32 32, %s17
          %p1422 = scmp.lt.s32.totalorder %s1421, 63
          %s1423 = scalar_select %p1422, %s1421, 63
          %s1424 = smul.addr %s1423, 8
          %s1425 = scalar_lea.vmem %s3, %s1424
        $region86: #{tpu_custom_call.1} parent=77 // pred_fallthru
          _
        // Predicated region
        $region87: #{tpu_custom_call.1} parent=77 // pred_check
          %p1426 = pneg %p139
        $region88: #{tpu_custom_call.1} parent=77 // pred_check_branch
          %1428 = sbr.rel (%p1426) target = $region90
        $region89: #{tpu_custom_call.1} parent=77 // pred_region
          %s1429 = smul.u32 32, %s17
          %p1430 = scmp.lt.s32.totalorder %s1429, 63
          %s1431 = scalar_select %p1430, %s1429, 63
          %s1432 = smul.addr %s1431, 8
          %s1433 = scalar_lea.vmem %s4, %s1432
        $region90: #{tpu_custom_call.1} parent=77 // pred_fallthru
          _
      $region78: #{tpu_custom_call.1} parent=5 // pred_fallthru
        _
    $region6: #{tpu_custom_call.1} parent=1 // loop_footer
      %s15 = sadd.s32 1, %s11
    $region7: #{tpu_custom_call.1} parent=1 // loop_footer_branch
      %10 = sbr.rel target = $region3
    $region8: #{tpu_custom_call.1} parent=1 // loop_exit
      _

</llo_original>
